<compile_context>
chip_gen: v6e
topology: v6e:2x2x1
jax: 0.10.0
libtpu: 0.0.40
codegen_flags: <defaults>
</compile_context>

<pallas_src>
import numpy as np
import jax
import jax.numpy as jnp
from jax import lax
from jax.experimental import pallas as pl
from jax.experimental.pallas import tpu as pltpu

# ---- synthetic cfg (mirrors the module's constants, scaled down) ------------
ANCHOR_RATIOS = (0.5, 1.0, 2.0)
ANCHOR_SCALES = (8, 16, 32, 64, 128)
FEAT_STRIDES = (4, 8, 16, 32, 32)
RPN_POST_NMS_TOP_N = 16          # cfg.TEST.RPN_POST_NMS_TOP_N (small synthetic)
HIDDEN = 32                      # RPN 3x3 conv width (512 in the real model)
A = len(ANCHOR_RATIOS)           # anchors per location (one scale per level)

LANE = 128
HID_PAD = 128                    # hidden padded to one lane width (HIDDEN < 128)
OUT_PAD = 128                    # fused head output (A + 4A = 15) padded to 128
HW_TILE = 512                    # rows per grid step (covers all levels in 1 step
                                 # here; sweep 512-1024, cap ~512 on v7x at
                                 # production Cin=512 to respect 64 MiB VMEM)


def _round_up(x, m):
    return ((x + m - 1) // m) * m


# ---------------------------- Pallas kernel ----------------------------------
def _rpn_head_kernel(patch_ref, wconv_ref, bconv_ref, whead_ref, bhead_ref,
                     out_ref):
    # patch_ref : (1, HW_TILE, KIN_PAD) bf16 im2col'ed 3x3 neighbourhoods,
    #             K zero-padded to a multiple of 128 lanes.
    # wconv_ref : (KIN_PAD, HID_PAD)    bf16 3x3 conv weights (zero-padded rows/cols)
    # bconv_ref : (1, HID_PAD)          f32
    # whead_ref : (HID_PAD, OUT_PAD)    bf16 fused head: cols [0:A] = w_fg - w_bg
    #                                   (softmax fg prob == sigmoid of this logit),
    #                                   cols [A:5A] = bbox weights, rest zero.
    # bhead_ref : (1, OUT_PAD)          f32
    # out_ref   : (1, HW_TILE, OUT_PAD) bf16: [0:A] fg probs, [A:5A] bbox deltas.
    p = patch_ref[0]                                                   # (HW, K)
    h = jnp.dot(p, wconv_ref[...], preferred_element_type=jnp.float32)
    h = jnp.maximum(h + bconv_ref[0], 0.0)                             # conv3x3+ReLU (f32)

    raw = jnp.dot(h.astype(whead_ref.dtype), whead_ref[...],
                  preferred_element_type=jnp.float32) + bhead_ref[0]   # (HW, 128)

    # fg prob = sigmoid(fg_logit) on the first A lanes; pass deltas through.
    sig = pl.reciprocal(1.0 + jnp.exp(-raw), approx=True)              # EUP slots
    lane = lax.broadcasted_iota(jnp.int32, raw.shape, dimension=1)
    out_ref[0] = jnp.where(lane < A, sig, raw).astype(out_ref.dtype)   # one lane-dense store


def rpn_head(patches, w_conv, b_conv, w_head, b_head, *, hw_tile=HW_TILE):
    """patches: (B, HW_pad, KIN_PAD) bf16, HW_pad a multiple of hw_tile."""
    B, HW, Kin = patches.shape
    Chid = w_conv.shape[1]
    Cout = w_head.shape[1]
    n_hw = HW // hw_tile
    single = pl.Buffered(1)     # invariant blocks: no double buffering
    return pl.pallas_call(
        _rpn_head_kernel,
        out_shape=jax.ShapeDtypeStruct((B, HW, Cout), jnp.bfloat16),
        grid_spec=pltpu.PrefetchScalarGridSpec(
            num_scalar_prefetch=0,
            grid=(B, n_hw),
            in_specs=[
                pl.BlockSpec((1, hw_tile, Kin), lambda b, t: (b, t, 0)),
                pl.BlockSpec((Kin, Chid), lambda b, t: (0, 0),
                             pipeline_mode=single),
                pl.BlockSpec((1, Chid), lambda b, t: (0, 0),
                             pipeline_mode=single),
                pl.BlockSpec((Chid, Cout), lambda b, t: (0, 0),
                             pipeline_mode=single),
                pl.BlockSpec((1, Cout), lambda b, t: (0, 0),
                             pipeline_mode=single),
            ],
            out_specs=pl.BlockSpec((1, hw_tile, Cout), lambda b, t: (b, t, 0)),
        ),
        compiler_params=pltpu.CompilerParams(
            dimension_semantics=("parallel", "parallel"),
            # ~1 MiB of VMEM actually used at these sizes; 32 MiB is safe on
            # every generation.  At production sizes on v7x re-derive (patch
            # tile + single-buffered weights must stay well under 64 MiB).
            vmem_limit_bytes=32 * 1024 * 1024),
    )(patches, w_conv, b_conv, w_head, b_head)


# ------------------------------ JAX glue --------------------------------------
def im2col3x3(x):
    """x: (B, H, W, C) NHWC -> (B, H*W, 9*C), pad=1, stride=1."""
    B, H, W, C = x.shape
    xp = jnp.pad(x, ((0, 0), (1, 1), (1, 1), (0, 0)))
    cols = [xp[:, dy:dy + H, dx:dx + W, :] for dy in range(3) for dx in range(3)]
    return jnp.concatenate(cols, axis=-1).reshape(B, H * W, 9 * C)


def _whctrs(anchor):
    w = anchor[2] - anchor[0] + 1
    h = anchor[3] - anchor[1] + 1
    return w, h, anchor[0] + 0.5 * (w - 1), anchor[1] + 0.5 * (h - 1)


def _mkanchors(ws, hs, x_ctr, y_ctr):
    ws = ws[:, None]
    hs = hs[:, None]
    return np.hstack([x_ctr - 0.5 * (ws - 1), y_ctr - 0.5 * (hs - 1),
                      x_ctr + 0.5 * (ws - 1), y_ctr + 0.5 * (hs - 1)])


def generate_anchors(base_size, ratios, scales):
    base = np.array([1, 1, base_size, base_size], dtype=np.float64) - 1
    w, h, xc, yc = _whctrs(base)
    size_ratios = (w * h) / np.array(ratios)
    ws = np.round(np.sqrt(size_ratios))
    hs = np.round(ws * np.array(ratios))
    ratio_anchors = _mkanchors(ws, hs, xc, yc)
    out = []
    for i in range(ratio_anchors.shape[0]):
        w2, h2, xc2, yc2 = _whctrs(ratio_anchors[i])
        out.append(_mkanchors(w2 * np.array(scales), h2 * np.array(scales), xc2, yc2))
    return np.vstack(out).astype(np.float32)


def shifted_anchors(H, W, feat_stride, scale):
    base = generate_anchors(feat_stride, list(ANCHOR_RATIOS), [scale])     # (A, 4)
    sx, sy = np.meshgrid(np.arange(W) * feat_stride, np.arange(H) * feat_stride)
    shifts = np.stack([sx.ravel(), sy.ravel(), sx.ravel(), sy.ravel()],
                      axis=1).astype(np.float32)                           # (HW, 4)
    return jnp.asarray((shifts[:, None, :] + base[None, :, :]).reshape(-1, 4))


def decode_proposals(prob, deltas, anchors, img_shape):
    B = prob.shape[0]
    scores = prob.reshape(B, -1)                     # (B, HW*A), anchor-fastest
    deltas = deltas.reshape(B, -1, 4)                # (B, HW*A, 4)
    widths = anchors[:, 2] - anchors[:, 0] + 1.0
    heights = anchors[:, 3] - anchors[:, 1] + 1.0
    ctr_x = anchors[:, 0] + 0.5 * widths
    ctr_y = anchors[:, 1] + 0.5 * heights
    dx, dy, dw, dh = deltas[..., 0], deltas[..., 1], deltas[..., 2], deltas[..., 3]
    pred_ctr_x = dx * widths + ctr_x
    pred_ctr_y = dy * heights + ctr_y
    pred_w = jnp.exp(dw) * widths
    pred_h = jnp.exp(dh) * heights
    img_h, img_w = img_shape
    x1 = jnp.clip(pred_ctr_x - 0.5 * pred_w, 0.0, img_w - 1.0)
    y1 = jnp.clip(pred_ctr_y - 0.5 * pred_h, 0.0, img_h - 1.0)
    x2 = jnp.clip(pred_ctr_x + 0.5 * pred_w, 0.0, img_w - 1.0)
    y2 = jnp.clip(pred_ctr_y + 0.5 * pred_h, 0.0, img_h - 1.0)
    return jnp.stack([x1, y1, x2, y2], axis=-1), scores


def init_params(key, cin, chid, a):
    """Raw RPN parameters in the original (unfused) layout."""
    ks = jax.random.split(key, 3)
    return (jax.random.normal(ks[0], (9 * cin, chid), jnp.float32) * 0.01,   # w_conv
            jnp.zeros((chid,), jnp.float32),                                 # b_conv
            jax.random.normal(ks[1], (chid, 2 * a), jnp.float32) * 0.01,     # w_cls [bg|fg]
            jnp.zeros((2 * a,), jnp.float32),                                # b_cls
            jax.random.normal(ks[2], (chid, 4 * a), jnp.float32) * 0.01,     # w_bbox
            jnp.zeros((4 * a,), jnp.float32))                                # b_bbox


def pack_params(params, a, kin_pad, hid_pad=HID_PAD, out_pad=OUT_PAD):
    """Fuse cls+bbox heads, fold softmax->sigmoid logit, pad to lane widths, cast bf16."""
    w_conv, b_conv, w_cls, b_cls, w_bbox, b_bbox = params
    kin, chid = w_conv.shape
    # softmax fg prob over [bg|fg] == sigmoid((fg - bg) logit): fold into weights.
    # NOTE: assumes the cls channel layout is [bg_0..bg_{A-1}, fg_0..fg_{A-1}]
    # (the reference model's score-reshape convention).
    w_logit = w_cls[:, a:] - w_cls[:, :a]                       # (chid, A)
    b_logit = b_cls[a:] - b_cls[:a]                             # (A,)
    w_head = jnp.concatenate([w_logit, w_bbox], axis=1)         # (chid, 5A)
    b_head = jnp.concatenate([b_logit, b_bbox], axis=0)         # (5A,)

    w_conv_p = jnp.zeros((kin_pad, hid_pad), jnp.float32).at[:kin, :chid].set(w_conv)
    b_conv_p = jnp.zeros((1, hid_pad), jnp.float32).at[0, :chid].set(b_conv)
    w_head_p = jnp.zeros((hid_pad, out_pad), jnp.float32).at[:chid, :5 * a].set(w_head)
    b_head_p = jnp.zeros((1, out_pad), jnp.float32).at[0, :5 * a].set(b_head)
    return (w_conv_p.astype(jnp.bfloat16), b_conv_p,
            w_head_p.astype(jnp.bfloat16), b_head_p)


def rpn_forward(packed_params, feature_maps_nchw, gt_bboxes, img_shape,
                hw_tile=HW_TILE):
    """Returns (rois (B, TOP_N, 5), rpn_loss_cls, rpn_loss_bbox)."""
    B = gt_bboxes.shape[0]
    kin_pad = packed_params[0].shape[0]

    # im2col every pyramid level (same 9*Cin), concat along HW -> one fused call.
    patches_all, anchors_all = [], []
    for idx, feat in enumerate(feature_maps_nchw):
        x = jnp.transpose(feat, (0, 2, 3, 1)).astype(jnp.float32)   # NCHW -> NHWC
        H, W = x.shape[1], x.shape[2]
        patches_all.append(im2col3x3(x))
        anchors_all.append(shifted_anchors(H, W, FEAT_STRIDES[idx], ANCHOR_SCALES[idx]))
    patches = jnp.concatenate(patches_all, axis=1)                  # (B, HW_tot, 9*Cin)
    anchors = jnp.concatenate(anchors_all, axis=0)                  # (HW_tot*A, 4)

    hw_total, kin = patches.shape[1], patches.shape[2]
    hw_pad = _round_up(hw_total, hw_tile)
    # pad rows to the tile size and the K dim to a lane-dense multiple of 128
    patches = jnp.pad(patches, ((0, 0), (0, hw_pad - hw_total), (0, kin_pad - kin)))
    patches = patches.astype(jnp.bfloat16)

    head = rpn_head(patches, *packed_params, hw_tile=hw_tile)       # (B, hw_pad, 128) bf16
    head = head[:, :hw_total, :].astype(jnp.float32)
    prob = head[:, :, :A]                                           # fg probabilities
    deltas = head[:, :, A:A + 4 * A]                                # bbox deltas

    boxes_all, scores_all = decode_proposals(prob, deltas, anchors, img_shape)

    # TODO(synk): greedy IoU-based NMS is data-dependent/sequential; replaced by
    # a per-image top-k score selection (same output shape/semantics of padding).
    top_scores, top_idx = lax.top_k(scores_all, RPN_POST_NMS_TOP_N)
    top_boxes = jnp.take_along_axis(boxes_all, top_idx[..., None], axis=1)
    batch_idx = jnp.broadcast_to(
        jnp.arange(B, dtype=jnp.float32)[:, None, None],
        (B, RPN_POST_NMS_TOP_N, 1))
    rois = jnp.concatenate([batch_idx, top_boxes], axis=-1)         # (B, TOP_N, 5)

    # TODO(synk): _AnchorTargetLayer (IoU matching + random sampling) and the
    # cls/bbox training losses are not implemented; inference-mode losses are 0.
    rpn_loss_cls = jnp.float32(0.0)
    rpn_loss_bbox = jnp.float32(0.0)
    return rois, rpn_loss_cls, rpn_loss_bbox


# ------------------------------- main -----------------------------------------
if __name__ == "__main__":
    key = jax.random.PRNGKey(0)
    k_par, k_gt, *k_feats = jax.random.split(key, 7)

    B, DIM = 2, 4                   # batch, input feature depth (module arg `dim`)
    IMG_SHAPE = (64, 64)            # (H, W)
    spatials = (16, 8, 4, 2, 2)     # p2..p6 spatial sizes consistent with strides

    feature_maps = tuple(
        jax.random.normal(k_feats[i], (B, DIM, s, s), jnp.float32)
        for i, s in enumerate(spatials))
    gt_bboxes = jax.random.uniform(k_gt, (B, 3, 4), jnp.float32) * 63.0

    KIN_PAD = _round_up(9 * DIM, LANE)      # 36 -> 128 lane-dense K dim
    raw_params = init_params(k_par, DIM, HIDDEN, A)
    packed = pack_params(raw_params, A, KIN_PAD)

    rois, loss_cls, loss_bbox = rpn_forward(packed, feature_maps, gt_bboxes, IMG_SHAPE)
    jax.block_until_ready(rois)
    jax.block_until_ready(loss_cls)
    jax.block_until_ready(loss_bbox)

    assert rois.shape == (B, RPN_POST_NMS_TOP_N, 5)
    assert bool(jnp.all(jnp.isfinite(rois)))
    print("KERNEL_OK")
</pallas_src>

<mosaic_0001>
module attributes {stable_mosaic.version = 11 : i64} {
  func.func @_rpn_head_kernel(%arg0: i32, %arg1: i32, %arg2: memref<1x512x128xbf16, #tpu.memory_space<vmem>>, %arg3: memref<128x128xbf16, #tpu.memory_space<vmem>>, %arg4: memref<1x128xf32, #tpu.memory_space<vmem>>, %arg5: memref<128x128xbf16, #tpu.memory_space<vmem>>, %arg6: memref<1x128xf32, #tpu.memory_space<vmem>>, %arg7: memref<1x512x128xbf16, #tpu.memory_space<vmem>>) attributes {dimension_semantics = [#tpu.dimension_semantics<parallel>, #tpu.dimension_semantics<parallel>], iteration_bounds = array<i64: 2, 1>, scalar_prefetch = 0 : i64, scratch_operands = 0 : i64, tpu.core_type = #tpu.core_type<tc>, window_params = [{transform_indices = @transform_0, window_bounds = array<i64: 1, 512, 128>}, {pipeline_mode = #tpu.pipeline_mode<synchronous>, transform_indices = @transform_1, window_bounds = array<i64: 128, 128>}, {pipeline_mode = #tpu.pipeline_mode<synchronous>, transform_indices = @transform_2, window_bounds = array<i64: 1, 128>}, {pipeline_mode = #tpu.pipeline_mode<synchronous>, transform_indices = @transform_3, window_bounds = array<i64: 128, 128>}, {pipeline_mode = #tpu.pipeline_mode<synchronous>, transform_indices = @transform_4, window_bounds = array<i64: 1, 128>}, {transform_indices = @transform_5, window_bounds = array<i64: 1, 512, 128>}]} {
    %c0 = arith.constant 0 : index
    %c0_0 = arith.constant 0 : index
    %c0_1 = arith.constant 0 : index
    %0 = vector.load %arg2[%c0, %c0_0, %c0_1] : memref<1x512x128xbf16, #tpu.memory_space<vmem>>, vector<1x512x128xbf16>
    %1 = vector.shape_cast %0 : vector<1x512x128xbf16> to vector<512x128xbf16>
    %c0_2 = arith.constant 0 : index
    %c0_3 = arith.constant 0 : index
    %2 = vector.load %arg3[%c0_2, %c0_3] : memref<128x128xbf16, #tpu.memory_space<vmem>>, vector<128x128xbf16>
    %cst = arith.constant dense<0.000000e+00> : vector<512x128xf32>
    %3 = tpu.matmul %1, %2, %cst {dimension_numbers = #tpu.dot_dimension_numbers<[1], [0], [0], [1], [0, 0, 1, 1], [], []>} : vector<512x128xbf16>, vector<128x128xbf16>, vector<512x128xf32> -> vector<512x128xf32>
    %c0_4 = arith.constant 0 : index
    %c0_5 = arith.constant 0 : index
    %4 = vector.load %arg4[%c0_4, %c0_5] : memref<1x128xf32, #tpu.memory_space<vmem>>, vector<1x128xf32>
    %5 = vector.shape_cast %4 : vector<1x128xf32> to vector<128xf32>
    %6 = vector.shape_cast %5 : vector<128xf32> to vector<1x128xf32>
    %7 = vector.broadcast %6 : vector<1x128xf32> to vector<512x128xf32>
    %8 = arith.addf %3, %7 : vector<512x128xf32>
    %cst_6 = arith.constant 0.000000e+00 : f32
    %9 = vector.broadcast %cst_6 : f32 to vector<512x128xf32>
    %10 = arith.maximumf %8, %9 : vector<512x128xf32>
    %11 = arith.truncf %10 : vector<512x128xf32> to vector<512x128xbf16>
    %c0_7 = arith.constant 0 : index
    %c0_8 = arith.constant 0 : index
    %12 = vector.load %arg5[%c0_7, %c0_8] : memref<128x128xbf16, #tpu.memory_space<vmem>>, vector<128x128xbf16>
    %cst_9 = arith.constant dense<0.000000e+00> : vector<512x128xf32>
    %13 = tpu.matmul %11, %12, %cst_9 {dimension_numbers = #tpu.dot_dimension_numbers<[1], [0], [0], [1], [0, 0, 1, 1], [], []>} : vector<512x128xbf16>, vector<128x128xbf16>, vector<512x128xf32> -> vector<512x128xf32>
    %c0_10 = arith.constant 0 : index
    %c0_11 = arith.constant 0 : index
    %14 = vector.load %arg6[%c0_10, %c0_11] : memref<1x128xf32, #tpu.memory_space<vmem>>, vector<1x128xf32>
    %15 = vector.shape_cast %14 : vector<1x128xf32> to vector<128xf32>
    %16 = vector.shape_cast %15 : vector<128xf32> to vector<1x128xf32>
    %17 = vector.broadcast %16 : vector<1x128xf32> to vector<512x128xf32>
    %18 = arith.addf %13, %17 : vector<512x128xf32>
    %cst_12 = arith.constant 0.000000e+00 : f32
    %19 = vector.broadcast %cst_12 : f32 to vector<512x128xf32>
    %20 = arith.subf %19, %18 : vector<512x128xf32>
    %21 = math.exp %20 : vector<512x128xf32>
    %cst_13 = arith.constant 1.000000e+00 : f32
    %22 = vector.broadcast %cst_13 : f32 to vector<512x128xf32>
    %23 = arith.addf %22, %21 : vector<512x128xf32>
    %24 = tpu.reciprocal %23 {approx = true} : vector<512x128xf32> -> vector<512x128xf32>
    %25 = tpu.iota {dimensions = array<i32: 1>} : vector<512x128xi32>
    %c3_i32 = arith.constant 3 : i32
    %26 = vector.broadcast %c3_i32 : i32 to vector<512x128xi32>
    %27 = arith.cmpi slt, %25, %26 : vector<512x128xi32>
    %28 = arith.select %27, %24, %18 : vector<512x128xi1>, vector<512x128xf32>
    %29 = arith.truncf %28 : vector<512x128xf32> to vector<512x128xbf16>
    %c0_14 = arith.constant 0 : index
    %c0_15 = arith.constant 0 : index
    %c0_16 = arith.constant 0 : index
    %30 = vector.load %arg7[%c0_14, %c0_15, %c0_16] : memref<1x512x128xbf16, #tpu.memory_space<vmem>>, vector<1x512x128xbf16>
    %31 = vector.shape_cast %30 : vector<1x512x128xbf16> to vector<512x128xbf16>
    %32 = vector.shape_cast %29 : vector<512x128xbf16> to vector<1x512x128xbf16>
    tpu.vector_store %arg7[%c0_14, %c0_15, %c0_16], %32 {strides = array<i32>} : memref<1x512x128xbf16, #tpu.memory_space<vmem>>, vector<1x512x128xbf16>,
    return
  }
  func.func @transform_0(%arg0: i32, %arg1: i32) -> (i32, i32, i32) {
    %c0_i32 = arith.constant 0 : i32
    %c0_i32_0 = arith.constant 0 : i32
    return %arg0, %arg1, %c0_i32 : i32, i32, i32
  }
  func.func @transform_1(%arg0: i32, %arg1: i32) -> (i32, i32) {
    %c0_i32 = arith.constant 0 : i32
    %c0_i32_0 = arith.constant 0 : i32
    %c0_i32_1 = arith.constant 0 : i32
    return %c0_i32, %c0_i32_0 : i32, i32
  }
  func.func @transform_2(%arg0: i32, %arg1: i32) -> (i32, i32) {
    %c0_i32 = arith.constant 0 : i32
    %c0_i32_0 = arith.constant 0 : i32
    %c0_i32_1 = arith.constant 0 : i32
    return %c0_i32, %c0_i32_0 : i32, i32
  }
  func.func @transform_3(%arg0: i32, %arg1: i32) -> (i32, i32) {
    %c0_i32 = arith.constant 0 : i32
    %c0_i32_0 = arith.constant 0 : i32
    %c0_i32_1 = arith.constant 0 : i32
    return %c0_i32, %c0_i32_0 : i32, i32
  }
  func.func @transform_4(%arg0: i32, %arg1: i32) -> (i32, i32) {
    %c0_i32 = arith.constant 0 : i32
    %c0_i32_0 = arith.constant 0 : i32
    %c0_i32_1 = arith.constant 0 : i32
    return %c0_i32, %c0_i32_0 : i32, i32
  }
  func.func @transform_5(%arg0: i32, %arg1: i32) -> (i32, i32, i32) {
    %c0_i32 = arith.constant 0 : i32
    %c0_i32_0 = arith.constant 0 : i32
    return %arg0, %arg1, %c0_i32 : i32, i32, i32
  }
}

</mosaic_0001>

<llo_original>
// kernel: tpu_custom_call.1
$region0: #{tpu_custom_call.1}
  #allocation0 [shape = 'u32[]', space=smem, size = 0x4, offset = 0x4, fixed_abs, tag = 'smem constant byte address 0x4 - core index']
  #allocation1 [shape = 'u32[144,128]{1,0:T(1,128)}', space=vmem, size = 0x12000, scoped, tag = 'internal scratch']
  %s0 = inlined_call_operand.hbm [shape: bf16[2,512,128], index: 0, kind: input, shape index: {}]
  %s1 = inlined_call_operand.hbm [shape: bf16[128,128], index: 1, kind: input, shape index: {}]
  %s2 = inlined_call_operand.vmem [shape: f32[1,128], index: 2, kind: input, shape index: {}]
  %s3 = inlined_call_operand.hbm [shape: bf16[128,128], index: 3, kind: input, shape index: {}]
  %s4 = inlined_call_operand.vmem [shape: f32[1,128], index: 4, kind: input, shape index: {}]
  %s5 = inlined_call_operand.hbm [shape: bf16[2,512,128], index: 5, kind: output, shape index: {}]
  %s6 = sld [smem:[#allocation0]]
  $region65: #{tpu_custom_call.1} parent=0
    _
  %s8 = ssub.s32 1, %s6
  %s9 = scalar_select 0, %s8, %s6
  $region1: #{tpu_custom_call.1} parent=0
    #allocation2 [shape = 'u8[262144]{0}', space=vmem, size = 0x40000, scoped, tag = 'input window, operand 0']
    #allocation3 [shape = 's32[2]{0}', space=sflag, size = 0x8, scoped, tag = 'scoped memory for tpu_custom_call.1']
    #allocation4 [shape = 's32[2]{0}', space=sflag, size = 0x8, scoped, tag = 'scoped memory for tpu_custom_call.1']
    #allocation5 [shape = 'u8[32768]{0}', space=vmem, size = 0x8000, scoped, tag = 'input window, operand 1, single buffered']
    #allocation6 [shape = 's32[1]{0}', space=sflag, size = 0x4, scoped, tag = 'scoped memory for tpu_custom_call.1']
    #allocation7 [shape = 'u8[32768]{0}', space=vmem, size = 0x8000, scoped, tag = 'input window, operand 3, single buffered']
    #allocation8 [shape = 'u8[262144]{0}', space=vmem, size = 0x40000, scoped, tag = 'output window, operand 0']
    %10 = vsyncpa [#allocation3], 0
    %s11 = scalar_lea.sflag [#allocation3], 1
    %12 = vsyncpa %s11, 0
    %13 = vsyncpa [#allocation6], 0
    %14 = vsyncpa [#allocation4], 0
    %s15 = scalar_lea.sflag [#allocation4], 1
    %16 = vsyncpa %s15, 0
    loop: start=0, step=1, limit=4
    $region2: #{tpu_custom_call.1} parent=1 // loop_pre_header
      _
    $region3: #{tpu_custom_call.1} parent=1 // loop_header
      %s18 = sphi 0, %s22
      %p19 = scmp.ge.s32.totalorder %s18, 4
      %s25 = sphi 0, %s37
      %s26 = sphi 0, %s33
      %s27 = sphi 0, %s25
      %s28 = sphi 0, %s26
      %s29 = sphi 0, %s27
      %s30 = sphi 0, %s28
      %s42 = sphi 0, %s44
      %s45 = sphi 0, %s42
      %s46 = sphi 0, %s45
      %s62 = sphi 0, %s46
      %s66 = sphi 0, %s66
      %s68 = sphi 0, %s66
      %s69 = sphi 0, %s68
      %s83 = sphi 0, %s69
      %s87 = sphi 0, %s87
      %s89 = sphi 0, %s87
      %s90 = sphi 0, %s89
      %s104 = sphi 0, %s90
      %s108 = sphi 0, %s108
      %s110 = sphi 0, %s108
      %s111 = sphi 0, %s110
      %s125 = sphi 0, %s111
      %s129 = sphi 0, %s129
      %s131 = sphi 0, %s129
      %s132 = sphi 0, %s131
      %s146 = sphi 0, %s132
      %s154 = sphi 0, %s156
      %s157 = sphi 0, %s154
      %s158 = sphi 0, %s157
      %s174 = sphi 0, %s158
    $region4: #{tpu_custom_call.1} parent=1 // loop_header_branch
      %21 = sbr.rel (%p19) target = $region8
    $region5: #{tpu_custom_call.1} parent=1 // loop_body
      %s23 = ssub.s32 %s18, 1
      %s24 = ssub.s32 %s18, 2
      %s31 = sadd.s32 1, %s26
      %p32 = scmp.ge.s32.totalorder %s31, 1
      %s33 = scalar_select %p32, 0, %s31
      %s34 = sadd.s32 1, %s25
      %s35 = scalar_select %p32, %s34, %s25
      %p36 = scmp.ge.s32.totalorder %s35, 2
      %s37 = scalar_select %p36, 0, %s35
      %s38 = ssub.s32 %s25, %s37
      %s39 = ssub.s32 %s26, %s33
      %s40 = sor.u32 %s38, %s39
      %p41 = scmp.eq.s32.totalorder %s40, 0
      %s43 = sadd.s32 %s42, 1
      %s44 = scalar_select %p41, %s42, %s43
      %p47 = pneg %p41
      %p48 = scmp.eq.s32.totalorder %s18, 1
      %p49 = por %p47, %p48
      %p50 = scmp.ne.s32.totalorder %s42, %s45
      %p51 = scmp.eq.s32.totalorder %s18, 0
      %p52 = por %p50, %p51
      %p53 = scmp.ne.s32.totalorder %s42, %s45
      %p54 = scmp.eq.s32.totalorder %s23, 1
      %p55 = por %p53, %p54
      %p56 = scmp.ne.s32.totalorder %s45, %s46
      %p57 = scmp.eq.s32.totalorder %s23, 0
      %p58 = por %p56, %p57
      %p59 = scmp.ne.s32.totalorder %s45, %s46
      %p60 = scmp.eq.s32.totalorder %s24, 1
      %p61 = por %p59, %p60
      %p63 = scmp.ne.s32.totalorder %s46, %s62
      %p64 = scmp.eq.s32.totalorder %s24, 0
      %p65 = por %p63, %p64
      %s67 = sadd.s32 %s66, 1
      %p70 = scmp.eq.s32.totalorder %s18, 1
      %p71 = scmp.ne.s32.totalorder %s66, %s68
      %p72 = scmp.eq.s32.totalorder %s18, 0
      %p73 = por %p71, %p72
      %p74 = scmp.ne.s32.totalorder %s66, %s68
      %p75 = scmp.eq.s32.totalorder %s23, 1
      %p76 = por %p74, %p75
      %p77 = scmp.ne.s32.totalorder %s68, %s69
      %p78 = scmp.eq.s32.totalorder %s23, 0
      %p79 = por %p77, %p78
      %p80 = scmp.ne.s32.totalorder %s68, %s69
      %p81 = scmp.eq.s32.totalorder %s24, 1
      %p82 = por %p80, %p81
      %p84 = scmp.ne.s32.totalorder %s69, %s83
      %p85 = scmp.eq.s32.totalorder %s24, 0
      %p86 = por %p84, %p85
      %s88 = sadd.s32 %s87, 1
      %p91 = scmp.eq.s32.totalorder %s18, 1
      %p92 = scmp.ne.s32.totalorder %s87, %s89
      %p93 = scmp.eq.s32.totalorder %s18, 0
      %p94 = por %p92, %p93
      %p95 = scmp.ne.s32.totalorder %s87, %s89
      %p96 = scmp.eq.s32.totalorder %s23, 1
      %p97 = por %p95, %p96
      %p98 = scmp.ne.s32.totalorder %s89, %s90
      %p99 = scmp.eq.s32.totalorder %s23, 0
      %p100 = por %p98, %p99
      %p101 = scmp.ne.s32.totalorder %s89, %s90
      %p102 = scmp.eq.s32.totalorder %s24, 1
      %p103 = por %p101, %p102
      %p105 = scmp.ne.s32.totalorder %s90, %s104
      %p106 = scmp.eq.s32.totalorder %s24, 0
      %p107 = por %p105, %p106
      %s109 = sadd.s32 %s108, 1
      %p112 = scmp.eq.s32.totalorder %s18, 1
      %p113 = scmp.ne.s32.totalorder %s108, %s110
      %p114 = scmp.eq.s32.totalorder %s18, 0
      %p115 = por %p113, %p114
      %p116 = scmp.ne.s32.totalorder %s108, %s110
      %p117 = scmp.eq.s32.totalorder %s23, 1
      %p118 = por %p116, %p117
      %p119 = scmp.ne.s32.totalorder %s110, %s111
      %p120 = scmp.eq.s32.totalorder %s23, 0
      %p121 = por %p119, %p120
      %p122 = scmp.ne.s32.totalorder %s110, %s111
      %p123 = scmp.eq.s32.totalorder %s24, 1
      %p124 = por %p122, %p123
      %p126 = scmp.ne.s32.totalorder %s111, %s125
      %p127 = scmp.eq.s32.totalorder %s24, 0
      %p128 = por %p126, %p127
      %s130 = sadd.s32 %s129, 1
      %p133 = scmp.eq.s32.totalorder %s18, 1
      %p134 = scmp.ne.s32.totalorder %s129, %s131
      %p135 = scmp.eq.s32.totalorder %s18, 0
      %p136 = por %p134, %p135
      %p137 = scmp.ne.s32.totalorder %s129, %s131
      %p138 = scmp.eq.s32.totalorder %s23, 1
      %p139 = por %p137, %p138
      %p140 = scmp.ne.s32.totalorder %s131, %s132
      %p141 = scmp.eq.s32.totalorder %s23, 0
      %p142 = por %p140, %p141
      %p143 = scmp.ne.s32.totalorder %s131, %s132
      %p144 = scmp.eq.s32.totalorder %s24, 1
      %p145 = por %p143, %p144
      %p147 = scmp.ne.s32.totalorder %s132, %s146
      %p148 = scmp.eq.s32.totalorder %s24, 0
      %p149 = por %p147, %p148
      %s150 = ssub.s32 %s25, %s37
      %s151 = ssub.s32 %s26, %s33
      %s152 = sor.u32 %s150, %s151
      %p153 = scmp.eq.s32.totalorder %s152, 0
      %s155 = sadd.s32 %s154, 1
      %s156 = scalar_select %p153, %s154, %s155
      %p159 = pneg %p153
      %p160 = scmp.eq.s32.totalorder %s18, 1
      %p161 = por %p159, %p160
      %p162 = scmp.ne.s32.totalorder %s154, %s157
      %p163 = scmp.eq.s32.totalorder %s18, 0
      %p164 = por %p162, %p163
      %p165 = scmp.ne.s32.totalorder %s154, %s157
      %p166 = scmp.eq.s32.totalorder %s23, 1
      %p167 = por %p165, %p166
      %p168 = scmp.ne.s32.totalorder %s157, %s158
      %p169 = scmp.eq.s32.totalorder %s23, 0
      %p170 = por %p168, %p169
      %p171 = scmp.ne.s32.totalorder %s157, %s158
      %p172 = scmp.eq.s32.totalorder %s24, 1
      %p173 = por %p171, %p172
      %p175 = scmp.ne.s32.totalorder %s158, %s174
      %p176 = scmp.eq.s32.totalorder %s24, 0
      %p177 = por %p175, %p176
      %p178 = scmp.le.s32.totalorder 1, %s18
      %p179 = scmp.lt.s32.totalorder %s18, 3
      %p180 = pnand %p178, %p179
      %p181 = pneg %p180
      // Predicated region
      $region9: #{tpu_custom_call.1} parent=5 // pred_check
        _
      $region10: #{tpu_custom_call.1} parent=5 // pred_check_branch
        %183 = sbr.rel (%p180) target = $region12
      $region11: #{tpu_custom_call.1} parent=5 // pred_region
        %s184 = ssub.s32 %s18, 1
        // Predicated region
        $region13: #{tpu_custom_call.1} parent=11 // pred_check
          %p185 = pneg %p79
        $region14: #{tpu_custom_call.1} parent=11 // pred_check_branch
          %187 = sbr.rel (%p185) target = $region16
        $region15: #{tpu_custom_call.1} parent=11 // pred_region
          %s189 = ssub.s32 1024, 1024
          %190 = vsyncadd [#allocation6], %s189
          %s191 = sshll.u32 [#allocation5], 4
          %s192 = int_to_ptr.vmem [resolvable:$true] %s191
          %197 = dma.hbm_to_vmem [thread:$0]  %s1, 1024, %s192, [#allocation6], 64, 64, 4
        $region16: #{tpu_custom_call.1} parent=11 // pred_fallthru
          _
        // Predicated region
        $region17: #{tpu_custom_call.1} parent=11 // pred_check
          %p198 = pneg %p100
        $region18: #{tpu_custom_call.1} parent=11 // pred_check_branch
          %200 = sbr.rel (%p198) target = $region20
        $region19: #{tpu_custom_call.1} parent=11 // pred_region
          _
        $region20: #{tpu_custom_call.1} parent=11 // pred_fallthru
          _
        // Predicated region
        $region21: #{tpu_custom_call.1} parent=11 // pred_check
          %p201 = pneg %p121
        $region22: #{tpu_custom_call.1} parent=11 // pred_check_branch
          %203 = sbr.rel (%p201) target = $region24
        $region23: #{tpu_custom_call.1} parent=11 // pred_region
          %s205 = ssub.s32 1024, 1024
          %206 = vsyncadd [#allocation6], %s205
          %s207 = sshll.u32 [#allocation7], 4
          %s208 = int_to_ptr.vmem [resolvable:$true] %s207
          %213 = dma.hbm_to_vmem [thread:$0]  %s3, 1024, %s208, [#allocation6], 64, 64, 4
        $region24: #{tpu_custom_call.1} parent=11 // pred_fallthru
          _
        // Predicated region
        $region25: #{tpu_custom_call.1} parent=11 // pred_check
          %p214 = pneg %p142
        $region26: #{tpu_custom_call.1} parent=11 // pred_check_branch
          %216 = sbr.rel (%p214) target = $region28
        $region27: #{tpu_custom_call.1} parent=11 // pred_region
          _
        $region28: #{tpu_custom_call.1} parent=11 // pred_fallthru
          _
      $region12: #{tpu_custom_call.1} parent=5 // pred_fallthru
        _
      %p217 = scmp.lt.s32.totalorder %s18, 2
      // Predicated region
      $region29: #{tpu_custom_call.1} parent=5 // pred_check
        %p218 = pneg %p217
      $region30: #{tpu_custom_call.1} parent=5 // pred_check_branch
        %220 = sbr.rel (%p218) target = $region32
      $region31: #{tpu_custom_call.1} parent=5 // pred_region
        // Predicated region
        $region33: #{tpu_custom_call.1} parent=31 // pred_check
          %p221 = pneg %p52
        $region34: #{tpu_custom_call.1} parent=31 // pred_check_branch
          %223 = sbr.rel (%p221) target = $region36
        $region35: #{tpu_custom_call.1} parent=31 // pred_region
          %s224 = sand.u32 %s42, 1
          %s225 = scalar_lea.sflag [#allocation3], %s224
          %s226 = sand.u32 %s42, 1
          %s227 = smul.addr %s226, 256
          %s228 = scalar_lea.vmem [#allocation2], %s227
          %s229 = smul.u32 64, %s26
          %s231 = ssub.s32 4096, 4096
          %232 = vsyncadd %s225, %s231
          %s233 = smul.addr %s25, 64
          %s234 = sadd.s32 %s229, %s233
          %s235 = smul.addr %s234, 64
          %s236 = scalar_lea.hbm %s0, %s235
          %s237 = sshll.u32 %s228, 4
          %s238 = int_to_ptr.vmem [resolvable:$true] %s237
          %243 = dma.hbm_to_vmem [thread:$0]  %s236, 4096, %s238, %s225, 64, 64, 4
        $region36: #{tpu_custom_call.1} parent=31 // pred_fallthru
          _
      $region32: #{tpu_custom_call.1} parent=5 // pred_fallthru
        _
      %p244 = scmp.le.s32.totalorder 1, %s18
      %p245 = scmp.lt.s32.totalorder %s18, 3
      %p246 = pnand %p244, %p245
      %p247 = pneg %p246
      // Predicated region
      $region37: #{tpu_custom_call.1} parent=5 // pred_check
        _
      $region38: #{tpu_custom_call.1} parent=5 // pred_check_branch
        %249 = sbr.rel (%p246) target = $region40
      $region39: #{tpu_custom_call.1} parent=5 // pred_region
        %s250 = ssub.s32 %s18, 1
        %s251 = sand.u32 %s45, 1
        %s252 = scalar_lea.sflag [#allocation3], %s251
        %s253 = sand.u32 %s45, 1
        %s254 = smul.addr %s253, 256
        %s255 = scalar_lea.vmem [#allocation2], %s254
        // Predicated region
        $region41: #{tpu_custom_call.1} parent=39 // pred_check
          %p256 = pneg %p58
        $region42: #{tpu_custom_call.1} parent=39 // pred_check_branch
          %258 = sbr.rel (%p256) target = $region44
        $region43: #{tpu_custom_call.1} parent=39 // pred_region
          %259 = dma.done %s252, 4096
        $region44: #{tpu_custom_call.1} parent=39 // pred_fallthru
          _
        // Predicated region
        $region45: #{tpu_custom_call.1} parent=39 // pred_check
          %p260 = pneg %p79
        $region46: #{tpu_custom_call.1} parent=39 // pred_check_branch
          %262 = sbr.rel (%p260) target = $region48
        $region47: #{tpu_custom_call.1} parent=39 // pred_region
          %263 = dma.done [#allocation6], 1024
        $region48: #{tpu_custom_call.1} parent=39 // pred_fallthru
          _
        // Predicated region
        $region49: #{tpu_custom_call.1} parent=39 // pred_check
          %p264 = pneg %p121
        $region50: #{tpu_custom_call.1} parent=39 // pred_check_branch
          %266 = sbr.rel (%p264) target = $region52
        $region51: #{tpu_custom_call.1} parent=39 // pred_region
          %267 = dma.done [#allocation6], 1024
        $region52: #{tpu_custom_call.1} parent=39 // pred_fallthru
          _
        %s268 = sand.u32 %s45, 1
        %s269 = scalar_lea.sflag [#allocation3], %s268
        %s270 = sand.u32 %s45, 1
        %s271 = smul.addr %s270, 256
        %s272 = scalar_lea.vmem [#allocation2], %s271
        %p273 = pneg %p58
        %p274 = pneg %p55
        %p275 = pneg %p79
        %p276 = pneg %p76
        %p277 = pneg %p100
        %p278 = pneg %p97
        %p279 = pneg %p121
        %p280 = pneg %p118
        %p281 = pneg %p142
        %p282 = pneg %p139
        %p283 = pneg %p170
        %p284 = pneg %p167
        %s285 = sand.u32 %s157, 1
        %s286 = scalar_lea.sflag [#allocation4], %s285
        %s287 = sand.u32 %s157, 1
        %s288 = smul.addr %s287, 256
        %s289 = scalar_lea.vmem [#allocation8], %s288
        %s290 = smul.u32 64, %s28
        %s291 = smul.u32 64, %s28
        %v293 = vld [vmem:[%s255] sm:$0xf]
        %v294 = vld [vmem:[%s255 + $0x4] sm:$0xf]
        %v295 = vld [vmem:[%s255 + $0x8] sm:$0xf]
        %v296 = vld [vmem:[%s255 + $0xc] sm:$0xf]
        %v297 = vld [vmem:[%s255 + $0x10] sm:$0xf]
        %v298 = vld [vmem:[%s255 + $0x14] sm:$0xf]
        %v299 = vld [vmem:[%s255 + $0x18] sm:$0xf]
        %v300 = vld [vmem:[%s255 + $0x1c] sm:$0xf]
        %v301 = vld [vmem:[%s255 + $0x20] sm:$0xf]
        %v302 = vld [vmem:[%s255 + $0x24] sm:$0xf]
        %v303 = vld [vmem:[%s255 + $0x28] sm:$0xf]
        %v304 = vld [vmem:[%s255 + $0x2c] sm:$0xf]
        %v305 = vld [vmem:[%s255 + $0x30] sm:$0xf]
        %v306 = vld [vmem:[%s255 + $0x34] sm:$0xf]
        %v307 = vld [vmem:[%s255 + $0x38] sm:$0xf]
        %v308 = vld [vmem:[%s255 + $0x3c] sm:$0xf]
        %v309 = vld [vmem:[%s255 + $0x40] sm:$0xf]
        %v310 = vld [vmem:[%s255 + $0x44] sm:$0xf]
        %v311 = vld [vmem:[%s255 + $0x48] sm:$0xf]
        %v312 = vld [vmem:[%s255 + $0x4c] sm:$0xf]
        %v313 = vld [vmem:[%s255 + $0x50] sm:$0xf]
        %v314 = vld [vmem:[%s255 + $0x54] sm:$0xf]
        %v315 = vld [vmem:[%s255 + $0x58] sm:$0xf]
        %v316 = vld [vmem:[%s255 + $0x5c] sm:$0xf]
        %v317 = vld [vmem:[%s255 + $0x60] sm:$0xf]
        %v318 = vld [vmem:[%s255 + $0x64] sm:$0xf]
        %v319 = vld [vmem:[%s255 + $0x68] sm:$0xf]
        %v320 = vld [vmem:[%s255 + $0x6c] sm:$0xf]
        %v321 = vld [vmem:[%s255 + $0x70] sm:$0xf]
        %v322 = vld [vmem:[%s255 + $0x74] sm:$0xf]
        %v323 = vld [vmem:[%s255 + $0x78] sm:$0xf]
        %v324 = vld [vmem:[%s255 + $0x7c] sm:$0xf]
        %v325 = vld [vmem:[%s255 + $0x80] sm:$0xf]
        %v326 = vld [vmem:[%s255 + $0x84] sm:$0xf]
        %v327 = vld [vmem:[%s255 + $0x88] sm:$0xf]
        %v328 = vld [vmem:[%s255 + $0x8c] sm:$0xf]
        %v329 = vld [vmem:[%s255 + $0x90] sm:$0xf]
        %v330 = vld [vmem:[%s255 + $0x94] sm:$0xf]
        %v331 = vld [vmem:[%s255 + $0x98] sm:$0xf]
        %v332 = vld [vmem:[%s255 + $0x9c] sm:$0xf]
        %v333 = vld [vmem:[%s255 + $0xa0] sm:$0xf]
        %v334 = vld [vmem:[%s255 + $0xa4] sm:$0xf]
        %v335 = vld [vmem:[%s255 + $0xa8] sm:$0xf]
        %v336 = vld [vmem:[%s255 + $0xac] sm:$0xf]
        %v337 = vld [vmem:[%s255 + $0xb0] sm:$0xf]
        %v338 = vld [vmem:[%s255 + $0xb4] sm:$0xf]
        %v339 = vld [vmem:[%s255 + $0xb8] sm:$0xf]
        %v340 = vld [vmem:[%s255 + $0xbc] sm:$0xf]
        %v341 = vld [vmem:[%s255 + $0xc0] sm:$0xf]
        %v342 = vld [vmem:[%s255 + $0xc4] sm:$0xf]
        %v343 = vld [vmem:[%s255 + $0xc8] sm:$0xf]
        %v344 = vld [vmem:[%s255 + $0xcc] sm:$0xf]
        %v345 = vld [vmem:[%s255 + $0xd0] sm:$0xf]
        %v346 = vld [vmem:[%s255 + $0xd4] sm:$0xf]
        %v347 = vld [vmem:[%s255 + $0xd8] sm:$0xf]
        %v348 = vld [vmem:[%s255 + $0xdc] sm:$0xf]
        %v349 = vld [vmem:[%s255 + $0xe0] sm:$0xf]
        %v350 = vld [vmem:[%s255 + $0xe4] sm:$0xf]
        %v351 = vld [vmem:[%s255 + $0xe8] sm:$0xf]
        %v352 = vld [vmem:[%s255 + $0xec] sm:$0xf]
        %v353 = vld [vmem:[%s255 + $0xf0] sm:$0xf]
        %v354 = vld [vmem:[%s255 + $0xf4] sm:$0xf]
        %v355 = vld [vmem:[%s255 + $0xf8] sm:$0xf]
        %v356 = vld [vmem:[%s255 + $0xfc] sm:$0xf]
        %v357 = vld [vmem:[#allocation5] sm:$0xf]
        %v358 = vld [vmem:[#allocation5 + $0x4] sm:$0xf]
        %v359 = vld [vmem:[#allocation5 + $0x8] sm:$0xf]
        %v360 = vld [vmem:[#allocation5 + $0xc] sm:$0xf]
        %v361 = vld [vmem:[#allocation5 + $0x10] sm:$0xf]
        %v362 = vld [vmem:[#allocation5 + $0x14] sm:$0xf]
        %v363 = vld [vmem:[#allocation5 + $0x18] sm:$0xf]
        %v364 = vld [vmem:[#allocation5 + $0x1c] sm:$0xf]
        %v365 = vld [vmem:[#allocation5 + $0x20] sm:$0xf]
        %v366 = vld [vmem:[#allocation5 + $0x24] sm:$0xf]
        %v367 = vld [vmem:[#allocation5 + $0x28] sm:$0xf]
        %v368 = vld [vmem:[#allocation5 + $0x2c] sm:$0xf]
        %v369 = vld [vmem:[#allocation5 + $0x30] sm:$0xf]
        %v370 = vld [vmem:[#allocation5 + $0x34] sm:$0xf]
        %v371 = vld [vmem:[#allocation5 + $0x38] sm:$0xf]
        %v372 = vld [vmem:[#allocation5 + $0x3c] sm:$0xf]
        %v373 = vld [vmem:[%s2] sm:$0x1]
        %v375 = vlaneseq
        %v376 = vshrl.u32 %v375, 7
        %v377 = vsub.s32 0, %v376
        %v378 = vrot.slane %v373, %v377
        %v444 = vunpack.c.l.b16 %v293
        %v445 = vunpack.c.l.b16 %v294
        %v446 = vunpack.c.l.b16 %v295
        %v447 = vunpack.c.l.b16 %v296
        %v448 = vunpack.c.l.b16 %v297
        %v449 = vunpack.c.l.b16 %v298
        %v450 = vunpack.c.l.b16 %v299
        %v451 = vunpack.c.l.b16 %v300
        %v452 = vunpack.c.l.b16 %v301
        %v453 = vunpack.c.l.b16 %v302
        %v454 = vunpack.c.l.b16 %v303
        %v455 = vunpack.c.l.b16 %v304
        %v456 = vunpack.c.l.b16 %v305
        %v457 = vunpack.c.l.b16 %v306
        %v458 = vunpack.c.l.b16 %v307
        %v459 = vunpack.c.l.b16 %v308
        %v460 = vunpack.c.l.b16 %v309
        %v461 = vunpack.c.l.b16 %v310
        %v462 = vunpack.c.l.b16 %v311
        %v463 = vunpack.c.l.b16 %v312
        %v464 = vunpack.c.l.b16 %v313
        %v465 = vunpack.c.l.b16 %v314
        %v466 = vunpack.c.l.b16 %v315
        %v467 = vunpack.c.l.b16 %v316
        %v468 = vunpack.c.l.b16 %v317
        %v469 = vunpack.c.l.b16 %v318
        %v470 = vunpack.c.l.b16 %v319
        %v471 = vunpack.c.l.b16 %v320
        %v472 = vunpack.c.l.b16 %v321
        %v473 = vunpack.c.l.b16 %v322
        %v474 = vunpack.c.l.b16 %v323
        %v475 = vunpack.c.l.b16 %v324
        %v476 = vunpack.c.l.b16 %v325
        %v477 = vunpack.c.l.b16 %v326
        %v478 = vunpack.c.l.b16 %v327
        %v479 = vunpack.c.l.b16 %v328
        %v480 = vunpack.c.l.b16 %v329
        %v481 = vunpack.c.l.b16 %v330
        %v482 = vunpack.c.l.b16 %v331
        %v483 = vunpack.c.l.b16 %v332
        %v484 = vunpack.c.l.b16 %v333
        %v485 = vunpack.c.l.b16 %v334
        %v486 = vunpack.c.l.b16 %v335
        %v487 = vunpack.c.l.b16 %v336
        %v488 = vunpack.c.l.b16 %v337
        %v489 = vunpack.c.l.b16 %v338
        %v490 = vunpack.c.l.b16 %v339
        %v491 = vunpack.c.l.b16 %v340
        %v492 = vunpack.c.l.b16 %v341
        %v493 = vunpack.c.l.b16 %v342
        %v494 = vunpack.c.l.b16 %v343
        %v495 = vunpack.c.l.b16 %v344
        %v496 = vunpack.c.l.b16 %v345
        %v497 = vunpack.c.l.b16 %v346
        %v498 = vunpack.c.l.b16 %v347
        %v499 = vunpack.c.l.b16 %v348
        %v500 = vunpack.c.l.b16 %v349
        %v501 = vunpack.c.l.b16 %v350
        %v502 = vunpack.c.l.b16 %v351
        %v503 = vunpack.c.l.b16 %v352
        %v504 = vunpack.c.l.b16 %v353
        %v505 = vunpack.c.l.b16 %v354
        %v506 = vunpack.c.l.b16 %v355
        %v507 = vunpack.c.l.b16 %v356
        %v508 = vpack.c.b16 %v445, %v444
        %v509 = vpack.c.b16 %v447, %v446
        %v510 = vpack.c.b16 %v449, %v448
        %v511 = vpack.c.b16 %v451, %v450
        %v512 = vpack.c.b16 %v453, %v452
        %v513 = vpack.c.b16 %v455, %v454
        %v514 = vpack.c.b16 %v457, %v456
        %v515 = vpack.c.b16 %v459, %v458
        %v516 = vpack.c.b16 %v461, %v460
        %v517 = vpack.c.b16 %v463, %v462
        %v518 = vpack.c.b16 %v465, %v464
        %v519 = vpack.c.b16 %v467, %v466
        %v520 = vpack.c.b16 %v469, %v468
        %v521 = vpack.c.b16 %v471, %v470
        %v522 = vpack.c.b16 %v473, %v472
        %v523 = vpack.c.b16 %v475, %v474
        %v524 = vpack.c.b16 %v477, %v476
        %v525 = vpack.c.b16 %v479, %v478
        %v526 = vpack.c.b16 %v481, %v480
        %v527 = vpack.c.b16 %v483, %v482
        %v528 = vpack.c.b16 %v485, %v484
        %v529 = vpack.c.b16 %v487, %v486
        %v530 = vpack.c.b16 %v489, %v488
        %v531 = vpack.c.b16 %v491, %v490
        %v532 = vpack.c.b16 %v493, %v492
        %v533 = vpack.c.b16 %v495, %v494
        %v534 = vpack.c.b16 %v497, %v496
        %v535 = vpack.c.b16 %v499, %v498
        %v536 = vpack.c.b16 %v501, %v500
        %v537 = vpack.c.b16 %v503, %v502
        %v538 = vpack.c.b16 %v505, %v504
        %v539 = vpack.c.b16 %v507, %v506
        %v588 = vunpack.c.l.b16 %v357
        %v589 = vunpack.c.l.b16 %v358
        %v590 = vunpack.c.l.b16 %v359
        %v591 = vunpack.c.l.b16 %v360
        %v592 = vunpack.c.l.b16 %v361
        %v593 = vunpack.c.l.b16 %v362
        %v594 = vunpack.c.l.b16 %v363
        %v595 = vunpack.c.l.b16 %v364
        %v596 = vunpack.c.l.b16 %v365
        %v597 = vunpack.c.l.b16 %v366
        %v598 = vunpack.c.l.b16 %v367
        %v599 = vunpack.c.l.b16 %v368
        %v600 = vunpack.c.l.b16 %v369
        %v601 = vunpack.c.l.b16 %v370
        %v602 = vunpack.c.l.b16 %v371
        %v603 = vunpack.c.l.b16 %v372
        %v604 = vpack.c.b16 %v589, %v588
        %v605 = vpack.c.b16 %v591, %v590
        %v606 = vpack.c.b16 %v593, %v592
        %v607 = vpack.c.b16 %v595, %v594
        %v608 = vpack.c.b16 %v597, %v596
        %v609 = vpack.c.b16 %v599, %v598
        %v610 = vpack.c.b16 %v601, %v600
        %v611 = vpack.c.b16 %v603, %v602
        %620 = vmatprep.subr.bf16.mxu0 0
        %621 = vmatpush1.bf16.msra.mxu0 %v611
        %622 = vmatprep.subr.bf16.mxu0 0
        %623 = vmatpush1.bf16.msra.mxu0 %v610
        %624 = vmatprep.subr.bf16.mxu0 0
        %625 = vmatpush1.bf16.msra.mxu0 %v609
        %626 = vmatprep.subr.bf16.mxu0 0
        %627 = vmatpush1.bf16.msra.mxu0 %v608
        %628 = vmatprep.subr.bf16.mxu0 0
        %629 = vmatpush1.bf16.msra.mxu0 %v607
        %630 = vmatprep.subr.bf16.mxu0 0
        %631 = vmatpush1.bf16.msra.mxu0 %v606
        %632 = vmatprep.subr.bf16.mxu0 0
        %633 = vmatpush1.bf16.msra.mxu0 %v605
        %634 = vmatprep.subr.bf16.mxu0 0
        %635 = vmatpush1.bf16.msra.mxu0 %v604
        %636 = vmatprep.subr.bf16.mxu0 0
        %637 = vmatpush2.bf16.msra.mxu0 0
        %638 = vmatprep.subr.bf16.mxu0 0
        %639 = vmatpush2.bf16.msra.mxu0 0
        %640 = vmatprep.subr.bf16.mxu0 0
        %641 = vmatpush2.bf16.msra.mxu0 0
        %642 = vmatprep.subr.bf16.mxu0 0
        %643 = vmatpush2.bf16.msra.mxu0 0
        %644 = vmatprep.subr.bf16.mxu0 0
        %645 = vmatpush2.bf16.msra.mxu0 0
        %646 = vmatprep.subr.bf16.mxu0 0
        %647 = vmatpush2.bf16.msra.mxu0 0
        %648 = vmatprep.subr.bf16.mxu0 0
        %649 = vmatpush2.bf16.msra.mxu0 0
        %650 = vmatprep.subr.bf16.mxu0 0
        %651 = vmatpush2.bf16.msra.mxu0 0
        %652 = vmatprep.mubr.bf16.mxu0 0
        %653 = vmatmul.mubr.bf16.gmra.mxu0 %v508
        %v654 = vpop.f32.mrf.mxu0
        %v655 = vadd.f32 %v378, %v654
        %v656 = vpop.f32.mrf.mxu0
        %v657 = vpop.f32.mrf.mxu0
        %v658 = vadd.f32 %v378, %v657
        %v659 = vpop.f32.mrf.mxu0
        %660 = vmatprep.mubr.bf16.mxu0 0
        %661 = vmatmul.mubr.bf16.gmra.mxu0 %v509
        %v662 = vpop.f32.mrf.mxu0
        %v663 = vadd.f32 %v378, %v662
        %v664 = vpop.f32.mrf.mxu0
        %v665 = vpop.f32.mrf.mxu0
        %v666 = vadd.f32 %v378, %v665
        %v667 = vpop.f32.mrf.mxu0
        %668 = vmatprep.mubr.bf16.mxu0 0
        %669 = vmatmul.mubr.bf16.gmra.mxu0 %v510
        %v670 = vpop.f32.mrf.mxu0
        %v671 = vadd.f32 %v378, %v670
        %v672 = vpop.f32.mrf.mxu0
        %v673 = vpop.f32.mrf.mxu0
        %v674 = vadd.f32 %v378, %v673
        %v675 = vpop.f32.mrf.mxu0
        %676 = vmatprep.mubr.bf16.mxu0 0
        %677 = vmatmul.mubr.bf16.gmra.mxu0 %v511
        %v678 = vpop.f32.mrf.mxu0
        %v679 = vadd.f32 %v378, %v678
        %v680 = vpop.f32.mrf.mxu0
        %v681 = vpop.f32.mrf.mxu0
        %v682 = vadd.f32 %v378, %v681
        %v683 = vpop.f32.mrf.mxu0
        %684 = vmatprep.mubr.bf16.mxu0 0
        %685 = vmatmul.mubr.bf16.gmra.mxu0 %v512
        %v686 = vpop.f32.mrf.mxu0
        %v687 = vadd.f32 %v378, %v686
        %v688 = vpop.f32.mrf.mxu0
        %v689 = vpop.f32.mrf.mxu0
        %v690 = vadd.f32 %v378, %v689
        %v691 = vpop.f32.mrf.mxu0
        %692 = vmatprep.mubr.bf16.mxu0 0
        %693 = vmatmul.mubr.bf16.gmra.mxu0 %v513
        %v694 = vpop.f32.mrf.mxu0
        %v695 = vadd.f32 %v378, %v694
        %v696 = vpop.f32.mrf.mxu0
        %v697 = vpop.f32.mrf.mxu0
        %v698 = vadd.f32 %v378, %v697
        %v699 = vpop.f32.mrf.mxu0
        %700 = vmatprep.mubr.bf16.mxu0 0
        %701 = vmatmul.mubr.bf16.gmra.mxu0 %v514
        %v702 = vpop.f32.mrf.mxu0
        %v703 = vadd.f32 %v378, %v702
        %v704 = vpop.f32.mrf.mxu0
        %v705 = vpop.f32.mrf.mxu0
        %v706 = vadd.f32 %v378, %v705
        %v707 = vpop.f32.mrf.mxu0
        %708 = vmatprep.mubr.bf16.mxu0 0
        %709 = vmatmul.mubr.bf16.gmra.mxu0 %v515
        %v710 = vpop.f32.mrf.mxu0
        %v711 = vadd.f32 %v378, %v710
        %v712 = vpop.f32.mrf.mxu0
        %v713 = vpop.f32.mrf.mxu0
        %v714 = vadd.f32 %v378, %v713
        %v715 = vpop.f32.mrf.mxu0
        %716 = vmatprep.mubr.bf16.mxu0 0
        %717 = vmatmul.mubr.bf16.gmra.mxu0 %v516
        %v718 = vpop.f32.mrf.mxu0
        %v719 = vadd.f32 %v378, %v718
        %v720 = vpop.f32.mrf.mxu0
        %v721 = vpop.f32.mrf.mxu0
        %v722 = vadd.f32 %v378, %v721
        %v723 = vpop.f32.mrf.mxu0
        %724 = vmatprep.mubr.bf16.mxu0 0
        %725 = vmatmul.mubr.bf16.gmra.mxu0 %v517
        %v726 = vpop.f32.mrf.mxu0
        %v727 = vadd.f32 %v378, %v726
        %v728 = vpop.f32.mrf.mxu0
        %v729 = vpop.f32.mrf.mxu0
        %v730 = vadd.f32 %v378, %v729
        %v731 = vpop.f32.mrf.mxu0
        %732 = vmatprep.mubr.bf16.mxu0 0
        %733 = vmatmul.mubr.bf16.gmra.mxu0 %v518
        %v734 = vpop.f32.mrf.mxu0
        %v735 = vadd.f32 %v378, %v734
        %v736 = vpop.f32.mrf.mxu0
        %v737 = vpop.f32.mrf.mxu0
        %v738 = vadd.f32 %v378, %v737
        %v739 = vpop.f32.mrf.mxu0
        %740 = vmatprep.mubr.bf16.mxu0 0
        %741 = vmatmul.mubr.bf16.gmra.mxu0 %v519
        %v742 = vpop.f32.mrf.mxu0
        %v743 = vadd.f32 %v378, %v742
        %v744 = vpop.f32.mrf.mxu0
        %v745 = vpop.f32.mrf.mxu0
        %v746 = vadd.f32 %v378, %v745
        %v747 = vpop.f32.mrf.mxu0
        %748 = vmatprep.mubr.bf16.mxu0 0
        %749 = vmatmul.mubr.bf16.gmra.mxu0 %v520
        %v750 = vpop.f32.mrf.mxu0
        %v751 = vadd.f32 %v378, %v750
        %v752 = vpop.f32.mrf.mxu0
        %v753 = vpop.f32.mrf.mxu0
        %v754 = vadd.f32 %v378, %v753
        %v755 = vpop.f32.mrf.mxu0
        %756 = vmatprep.mubr.bf16.mxu0 0
        %757 = vmatmul.mubr.bf16.gmra.mxu0 %v521
        %v758 = vpop.f32.mrf.mxu0
        %v759 = vadd.f32 %v378, %v758
        %v760 = vpop.f32.mrf.mxu0
        %v761 = vpop.f32.mrf.mxu0
        %v762 = vadd.f32 %v378, %v761
        %v763 = vpop.f32.mrf.mxu0
        %764 = vmatprep.mubr.bf16.mxu0 0
        %765 = vmatmul.mubr.bf16.gmra.mxu0 %v522
        %v766 = vpop.f32.mrf.mxu0
        %v767 = vadd.f32 %v378, %v766
        %v768 = vpop.f32.mrf.mxu0
        %v769 = vpop.f32.mrf.mxu0
        %v770 = vadd.f32 %v378, %v769
        %v771 = vpop.f32.mrf.mxu0
        %772 = vmatprep.mubr.bf16.mxu0 0
        %773 = vmatmul.mubr.bf16.gmra.mxu0 %v523
        %v774 = vpop.f32.mrf.mxu0
        %v775 = vadd.f32 %v378, %v774
        %v776 = vpop.f32.mrf.mxu0
        %v777 = vpop.f32.mrf.mxu0
        %v778 = vadd.f32 %v378, %v777
        %v779 = vpop.f32.mrf.mxu0
        %780 = vmatprep.mubr.bf16.mxu0 0
        %781 = vmatmul.mubr.bf16.gmra.mxu0 %v524
        %v782 = vpop.f32.mrf.mxu0
        %v783 = vadd.f32 %v378, %v782
        %v784 = vpop.f32.mrf.mxu0
        %v785 = vpop.f32.mrf.mxu0
        %v786 = vadd.f32 %v378, %v785
        %v787 = vpop.f32.mrf.mxu0
        %788 = vmatprep.mubr.bf16.mxu0 0
        %789 = vmatmul.mubr.bf16.gmra.mxu0 %v525
        %v790 = vpop.f32.mrf.mxu0
        %v791 = vadd.f32 %v378, %v790
        %v792 = vpop.f32.mrf.mxu0
        %v793 = vpop.f32.mrf.mxu0
        %v794 = vadd.f32 %v378, %v793
        %v795 = vpop.f32.mrf.mxu0
        %796 = vmatprep.mubr.bf16.mxu0 0
        %797 = vmatmul.mubr.bf16.gmra.mxu0 %v526
        %v798 = vpop.f32.mrf.mxu0
        %v799 = vadd.f32 %v378, %v798
        %v800 = vpop.f32.mrf.mxu0
        %v801 = vpop.f32.mrf.mxu0
        %v802 = vadd.f32 %v378, %v801
        %v803 = vpop.f32.mrf.mxu0
        %804 = vmatprep.mubr.bf16.mxu0 0
        %805 = vmatmul.mubr.bf16.gmra.mxu0 %v527
        %v806 = vpop.f32.mrf.mxu0
        %v807 = vadd.f32 %v378, %v806
        %v808 = vpop.f32.mrf.mxu0
        %v809 = vpop.f32.mrf.mxu0
        %v810 = vadd.f32 %v378, %v809
        %v811 = vpop.f32.mrf.mxu0
        %812 = vmatprep.mubr.bf16.mxu0 0
        %813 = vmatmul.mubr.bf16.gmra.mxu0 %v528
        %v814 = vpop.f32.mrf.mxu0
        %v815 = vadd.f32 %v378, %v814
        %v816 = vpop.f32.mrf.mxu0
        %v817 = vpop.f32.mrf.mxu0
        %v818 = vadd.f32 %v378, %v817
        %v819 = vpop.f32.mrf.mxu0
        %820 = vmatprep.mubr.bf16.mxu0 0
        %821 = vmatmul.mubr.bf16.gmra.mxu0 %v529
        %v822 = vpop.f32.mrf.mxu0
        %v823 = vadd.f32 %v378, %v822
        %v824 = vpop.f32.mrf.mxu0
        %v825 = vpop.f32.mrf.mxu0
        %v826 = vadd.f32 %v378, %v825
        %v827 = vpop.f32.mrf.mxu0
        %828 = vmatprep.mubr.bf16.mxu0 0
        %829 = vmatmul.mubr.bf16.gmra.mxu0 %v530
        %v830 = vpop.f32.mrf.mxu0
        %v831 = vadd.f32 %v378, %v830
        %v832 = vpop.f32.mrf.mxu0
        %v833 = vpop.f32.mrf.mxu0
        %v834 = vadd.f32 %v378, %v833
        %v835 = vpop.f32.mrf.mxu0
        %836 = vmatprep.mubr.bf16.mxu0 0
        %837 = vmatmul.mubr.bf16.gmra.mxu0 %v531
        %v838 = vpop.f32.mrf.mxu0
        %v839 = vadd.f32 %v378, %v838
        %v840 = vpop.f32.mrf.mxu0
        %v841 = vpop.f32.mrf.mxu0
        %v842 = vadd.f32 %v378, %v841
        %v843 = vpop.f32.mrf.mxu0
        %844 = vmatprep.mubr.bf16.mxu0 0
        %845 = vmatmul.mubr.bf16.gmra.mxu0 %v532
        %v846 = vpop.f32.mrf.mxu0
        %v847 = vadd.f32 %v378, %v846
        %v848 = vpop.f32.mrf.mxu0
        %v849 = vpop.f32.mrf.mxu0
        %v850 = vadd.f32 %v378, %v849
        %v851 = vpop.f32.mrf.mxu0
        %852 = vmatprep.mubr.bf16.mxu0 0
        %853 = vmatmul.mubr.bf16.gmra.mxu0 %v533
        %v854 = vpop.f32.mrf.mxu0
        %v855 = vadd.f32 %v378, %v854
        %v856 = vpop.f32.mrf.mxu0
        %v857 = vpop.f32.mrf.mxu0
        %v858 = vadd.f32 %v378, %v857
        %v859 = vpop.f32.mrf.mxu0
        %860 = vmatprep.mubr.bf16.mxu0 0
        %861 = vmatmul.mubr.bf16.gmra.mxu0 %v534
        %v862 = vpop.f32.mrf.mxu0
        %v863 = vadd.f32 %v378, %v862
        %v864 = vpop.f32.mrf.mxu0
        %v865 = vpop.f32.mrf.mxu0
        %v866 = vadd.f32 %v378, %v865
        %v867 = vpop.f32.mrf.mxu0
        %868 = vmatprep.mubr.bf16.mxu0 0
        %869 = vmatmul.mubr.bf16.gmra.mxu0 %v535
        %v870 = vpop.f32.mrf.mxu0
        %v871 = vadd.f32 %v378, %v870
        %v872 = vpop.f32.mrf.mxu0
        %v873 = vpop.f32.mrf.mxu0
        %v874 = vadd.f32 %v378, %v873
        %v875 = vpop.f32.mrf.mxu0
        %876 = vmatprep.mubr.bf16.mxu0 0
        %877 = vmatmul.mubr.bf16.gmra.mxu0 %v536
        %v878 = vpop.f32.mrf.mxu0
        %v879 = vadd.f32 %v378, %v878
        %v880 = vpop.f32.mrf.mxu0
        %v881 = vpop.f32.mrf.mxu0
        %v882 = vadd.f32 %v378, %v881
        %v883 = vpop.f32.mrf.mxu0
        %884 = vmatprep.mubr.bf16.mxu0 0
        %885 = vmatmul.mubr.bf16.gmra.mxu0 %v537
        %v886 = vpop.f32.mrf.mxu0
        %v887 = vadd.f32 %v378, %v886
        %v888 = vpop.f32.mrf.mxu0
        %v889 = vpop.f32.mrf.mxu0
        %v890 = vadd.f32 %v378, %v889
        %v891 = vpop.f32.mrf.mxu0
        %892 = vmatprep.mubr.bf16.mxu0 0
        %893 = vmatmul.mubr.bf16.gmra.mxu0 %v538
        %v894 = vpop.f32.mrf.mxu0
        %v895 = vadd.f32 %v378, %v894
        %v896 = vpop.f32.mrf.mxu0
        %v897 = vpop.f32.mrf.mxu0
        %v898 = vadd.f32 %v378, %v897
        %v899 = vpop.f32.mrf.mxu0
        %900 = vmatprep.mubr.bf16.mxu0 0
        %901 = vmatmul.mubr.bf16.gmra.mxu0 %v539
        %v902 = vpop.f32.mrf.mxu0
        %v903 = vadd.f32 %v378, %v902
        %v904 = vpop.f32.mrf.mxu0
        %v905 = vpop.f32.mrf.mxu0
        %v906 = vadd.f32 %v378, %v905
        %v907 = vpop.f32.mrf.mxu0
        %908 = vdwg.mxu0
        %v909 = vmax.f32 %v655, 0.0
        %v910 = vmax.f32 %v658, 0.0
        %v911 = vmax.f32 %v663, 0.0
        %v912 = vmax.f32 %v666, 0.0
        %v913 = vmax.f32 %v671, 0.0
        %v914 = vmax.f32 %v674, 0.0
        %v915 = vmax.f32 %v679, 0.0
        %v916 = vmax.f32 %v682, 0.0
        %v917 = vmax.f32 %v687, 0.0
        %v918 = vmax.f32 %v690, 0.0
        %v919 = vmax.f32 %v695, 0.0
        %v920 = vmax.f32 %v698, 0.0
        %v921 = vmax.f32 %v703, 0.0
        %v922 = vmax.f32 %v706, 0.0
        %v923 = vmax.f32 %v711, 0.0
        %v924 = vmax.f32 %v714, 0.0
        %v925 = vmax.f32 %v719, 0.0
        %v926 = vmax.f32 %v722, 0.0
        %v927 = vmax.f32 %v727, 0.0
        %v928 = vmax.f32 %v730, 0.0
        %v929 = vmax.f32 %v735, 0.0
        %v930 = vmax.f32 %v738, 0.0
        %v931 = vmax.f32 %v743, 0.0
        %v932 = vmax.f32 %v746, 0.0
        %v933 = vmax.f32 %v751, 0.0
        %v934 = vmax.f32 %v754, 0.0
        %v935 = vmax.f32 %v759, 0.0
        %v936 = vmax.f32 %v762, 0.0
        %v937 = vmax.f32 %v767, 0.0
        %v938 = vmax.f32 %v770, 0.0
        %v939 = vmax.f32 %v775, 0.0
        %v940 = vmax.f32 %v778, 0.0
        %v941 = vmax.f32 %v783, 0.0
        %v942 = vmax.f32 %v786, 0.0
        %v943 = vmax.f32 %v791, 0.0
        %v944 = vmax.f32 %v794, 0.0
        %v945 = vmax.f32 %v799, 0.0
        %v946 = vmax.f32 %v802, 0.0
        %v947 = vmax.f32 %v807, 0.0
        %v948 = vmax.f32 %v810, 0.0
        %v949 = vmax.f32 %v815, 0.0
        %v950 = vmax.f32 %v818, 0.0
        %v951 = vmax.f32 %v823, 0.0
        %v952 = vmax.f32 %v826, 0.0
        %v953 = vmax.f32 %v831, 0.0
        %v954 = vmax.f32 %v834, 0.0
        %v955 = vmax.f32 %v839, 0.0
        %v956 = vmax.f32 %v842, 0.0
        %v957 = vmax.f32 %v847, 0.0
        %v958 = vmax.f32 %v850, 0.0
        %v959 = vmax.f32 %v855, 0.0
        %v960 = vmax.f32 %v858, 0.0
        %v961 = vmax.f32 %v863, 0.0
        %v962 = vmax.f32 %v866, 0.0
        %v963 = vmax.f32 %v871, 0.0
        %v964 = vmax.f32 %v874, 0.0
        %v965 = vmax.f32 %v879, 0.0
        %v966 = vmax.f32 %v882, 0.0
        %v967 = vmax.f32 %v887, 0.0
        %v968 = vmax.f32 %v890, 0.0
        %v969 = vmax.f32 %v895, 0.0
        %v970 = vmax.f32 %v898, 0.0
        %v971 = vmax.f32 %v903, 0.0
        %v972 = vmax.f32 %v906, 0.0
        %v973 = vpack.c.bf16 %v910, %v909
        %v974 = vpack.c.bf16 %v912, %v911
        %v975 = vpack.c.bf16 %v914, %v913
        %v976 = vpack.c.bf16 %v916, %v915
        %v977 = vpack.c.bf16 %v918, %v917
        %v978 = vpack.c.bf16 %v920, %v919
        %v979 = vpack.c.bf16 %v922, %v921
        %v980 = vpack.c.bf16 %v924, %v923
        %v981 = vpack.c.bf16 %v926, %v925
        %v982 = vpack.c.bf16 %v928, %v927
        %v983 = vpack.c.bf16 %v930, %v929
        %v984 = vpack.c.bf16 %v932, %v931
        %v985 = vpack.c.bf16 %v934, %v933
        %v986 = vpack.c.bf16 %v936, %v935
        %v987 = vpack.c.bf16 %v938, %v937
        %v988 = vpack.c.bf16 %v940, %v939
        %v989 = vpack.c.bf16 %v942, %v941
        %v990 = vpack.c.bf16 %v944, %v943
        %v991 = vpack.c.bf16 %v946, %v945
        %v992 = vpack.c.bf16 %v948, %v947
        %v993 = vpack.c.bf16 %v950, %v949
        %v994 = vpack.c.bf16 %v952, %v951
        %v995 = vpack.c.bf16 %v954, %v953
        %v996 = vpack.c.bf16 %v956, %v955
        %v997 = vpack.c.bf16 %v958, %v957
        %v998 = vpack.c.bf16 %v960, %v959
        %v999 = vpack.c.bf16 %v962, %v961
        %v1000 = vpack.c.bf16 %v964, %v963
        %v1001 = vpack.c.bf16 %v966, %v965
        %v1002 = vpack.c.bf16 %v968, %v967
        %v1003 = vpack.c.bf16 %v970, %v969
        %v1004 = vpack.c.bf16 %v972, %v971
        %v1005 = vld [vmem:[#allocation7] sm:$0xf]
        %v1006 = vld [vmem:[#allocation7 + $0x4] sm:$0xf]
        %v1007 = vld [vmem:[#allocation7 + $0x8] sm:$0xf]
        %v1008 = vld [vmem:[#allocation7 + $0xc] sm:$0xf]
        %v1009 = vld [vmem:[#allocation7 + $0x10] sm:$0xf]
        %v1010 = vld [vmem:[#allocation7 + $0x14] sm:$0xf]
        %v1011 = vld [vmem:[#allocation7 + $0x18] sm:$0xf]
        %v1012 = vld [vmem:[#allocation7 + $0x1c] sm:$0xf]
        %v1013 = vld [vmem:[#allocation7 + $0x20] sm:$0xf]
        %v1014 = vld [vmem:[#allocation7 + $0x24] sm:$0xf]
        %v1015 = vld [vmem:[#allocation7 + $0x28] sm:$0xf]
        %v1016 = vld [vmem:[#allocation7 + $0x2c] sm:$0xf]
        %v1017 = vld [vmem:[#allocation7 + $0x30] sm:$0xf]
        %v1018 = vld [vmem:[#allocation7 + $0x34] sm:$0xf]
        %v1019 = vld [vmem:[#allocation7 + $0x38] sm:$0xf]
        %v1020 = vld [vmem:[#allocation7 + $0x3c] sm:$0xf]
        %v1021 = vld [vmem:[%s4] sm:$0x1]
        %v1023 = vlaneseq
        %v1024 = vshrl.u32 %v1023, 7
        %v1025 = vsub.s32 0, %v1024
        %v1026 = vrot.slane %v1021, %v1025
        %v1044 = vunpack.c.l.b16 %v1005
        %v1045 = vunpack.c.l.b16 %v1006
        %v1046 = vunpack.c.l.b16 %v1007
        %v1047 = vunpack.c.l.b16 %v1008
        %v1048 = vunpack.c.l.b16 %v1009
        %v1049 = vunpack.c.l.b16 %v1010
        %v1050 = vunpack.c.l.b16 %v1011
        %v1051 = vunpack.c.l.b16 %v1012
        %v1052 = vunpack.c.l.b16 %v1013
        %v1053 = vunpack.c.l.b16 %v1014
        %v1054 = vunpack.c.l.b16 %v1015
        %v1055 = vunpack.c.l.b16 %v1016
        %v1056 = vunpack.c.l.b16 %v1017
        %v1057 = vunpack.c.l.b16 %v1018
        %v1058 = vunpack.c.l.b16 %v1019
        %v1059 = vunpack.c.l.b16 %v1020
        %v1060 = vpack.c.b16 %v1045, %v1044
        %v1061 = vpack.c.b16 %v1047, %v1046
        %v1062 = vpack.c.b16 %v1049, %v1048
        %v1063 = vpack.c.b16 %v1051, %v1050
        %v1064 = vpack.c.b16 %v1053, %v1052
        %v1065 = vpack.c.b16 %v1055, %v1054
        %v1066 = vpack.c.b16 %v1057, %v1056
        %v1067 = vpack.c.b16 %v1059, %v1058
        %1076 = vmatprep.subr.bf16.mxu0 0
        %1077 = vmatpush1.bf16.msra.mxu0 %v1067
        %1078 = vmatprep.subr.bf16.mxu0 0
        %1079 = vmatpush1.bf16.msra.mxu0 %v1066
        %1080 = vmatprep.subr.bf16.mxu0 0
        %1081 = vmatpush1.bf16.msra.mxu0 %v1065
        %1082 = vmatprep.subr.bf16.mxu0 0
        %1083 = vmatpush1.bf16.msra.mxu0 %v1064
        %1084 = vmatprep.subr.bf16.mxu0 0
        %1085 = vmatpush1.bf16.msra.mxu0 %v1063
        %1086 = vmatprep.subr.bf16.mxu0 0
        %1087 = vmatpush1.bf16.msra.mxu0 %v1062
        %1088 = vmatprep.subr.bf16.mxu0 0
        %1089 = vmatpush1.bf16.msra.mxu0 %v1061
        %1090 = vmatprep.subr.bf16.mxu0 0
        %1091 = vmatpush1.bf16.msra.mxu0 %v1060
        %1092 = vmatprep.subr.bf16.mxu0 0
        %1093 = vmatpush2.bf16.msra.mxu0 0
        %1094 = vmatprep.subr.bf16.mxu0 0
        %1095 = vmatpush2.bf16.msra.mxu0 0
        %1096 = vmatprep.subr.bf16.mxu0 0
        %1097 = vmatpush2.bf16.msra.mxu0 0
        %1098 = vmatprep.subr.bf16.mxu0 0
        %1099 = vmatpush2.bf16.msra.mxu0 0
        %1100 = vmatprep.subr.bf16.mxu0 0
        %1101 = vmatpush2.bf16.msra.mxu0 0
        %1102 = vmatprep.subr.bf16.mxu0 0
        %1103 = vmatpush2.bf16.msra.mxu0 0
        %1104 = vmatprep.subr.bf16.mxu0 0
        %1105 = vmatpush2.bf16.msra.mxu0 0
        %1106 = vmatprep.subr.bf16.mxu0 0
        %1107 = vmatpush2.bf16.msra.mxu0 0
        %1108 = vmatprep.mubr.bf16.mxu0 0
        %1109 = vmatmul.mubr.bf16.gmra.mxu0 %v973
        %v1110 = vpop.f32.mrf.mxu0
        %v1111 = vadd.f32 %v1026, %v1110
        %v1112 = vpop.f32.mrf.mxu0
        %v1113 = vpop.f32.mrf.mxu0
        %v1114 = vadd.f32 %v1026, %v1113
        %v1115 = vpop.f32.mrf.mxu0
        %1116 = vmatprep.mubr.bf16.mxu0 0
        %1117 = vmatmul.mubr.bf16.gmra.mxu0 %v974
        %v1118 = vpop.f32.mrf.mxu0
        %v1119 = vadd.f32 %v1026, %v1118
        %v1120 = vpop.f32.mrf.mxu0
        %v1121 = vpop.f32.mrf.mxu0
        %v1122 = vadd.f32 %v1026, %v1121
        %v1123 = vpop.f32.mrf.mxu0
        %1124 = vmatprep.mubr.bf16.mxu0 0
        %1125 = vmatmul.mubr.bf16.gmra.mxu0 %v975
        %v1126 = vpop.f32.mrf.mxu0
        %v1127 = vadd.f32 %v1026, %v1126
        %v1128 = vpop.f32.mrf.mxu0
        %v1129 = vpop.f32.mrf.mxu0
        %v1130 = vadd.f32 %v1026, %v1129
        %v1131 = vpop.f32.mrf.mxu0
        %1132 = vmatprep.mubr.bf16.mxu0 0
        %1133 = vmatmul.mubr.bf16.gmra.mxu0 %v976
        %v1134 = vpop.f32.mrf.mxu0
        %v1135 = vadd.f32 %v1026, %v1134
        %v1136 = vpop.f32.mrf.mxu0
        %v1137 = vpop.f32.mrf.mxu0
        %v1138 = vadd.f32 %v1026, %v1137
        %v1139 = vpop.f32.mrf.mxu0
        %1140 = vmatprep.mubr.bf16.mxu0 0
        %1141 = vmatmul.mubr.bf16.gmra.mxu0 %v977
        %v1142 = vpop.f32.mrf.mxu0
        %v1143 = vadd.f32 %v1026, %v1142
        %v1144 = vpop.f32.mrf.mxu0
        %v1145 = vpop.f32.mrf.mxu0
        %v1146 = vadd.f32 %v1026, %v1145
        %v1147 = vpop.f32.mrf.mxu0
        %1148 = vmatprep.mubr.bf16.mxu0 0
        %1149 = vmatmul.mubr.bf16.gmra.mxu0 %v978
        %v1150 = vpop.f32.mrf.mxu0
        %v1151 = vadd.f32 %v1026, %v1150
        %v1152 = vpop.f32.mrf.mxu0
        %v1153 = vpop.f32.mrf.mxu0
        %v1154 = vadd.f32 %v1026, %v1153
        %v1155 = vpop.f32.mrf.mxu0
        %1156 = vmatprep.mubr.bf16.mxu0 0
        %1157 = vmatmul.mubr.bf16.gmra.mxu0 %v979
        %v1158 = vpop.f32.mrf.mxu0
        %v1159 = vadd.f32 %v1026, %v1158
        %v1160 = vpop.f32.mrf.mxu0
        %v1161 = vpop.f32.mrf.mxu0
        %v1162 = vadd.f32 %v1026, %v1161
        %v1163 = vpop.f32.mrf.mxu0
        %1164 = vmatprep.mubr.bf16.mxu0 0
        %1165 = vmatmul.mubr.bf16.gmra.mxu0 %v980
        %v1166 = vpop.f32.mrf.mxu0
        %v1167 = vadd.f32 %v1026, %v1166
        %v1168 = vpop.f32.mrf.mxu0
        %v1169 = vpop.f32.mrf.mxu0
        %v1170 = vadd.f32 %v1026, %v1169
        %v1171 = vpop.f32.mrf.mxu0
        %1172 = vmatprep.mubr.bf16.mxu0 0
        %1173 = vmatmul.mubr.bf16.gmra.mxu0 %v981
        %v1174 = vpop.f32.mrf.mxu0
        %v1175 = vadd.f32 %v1026, %v1174
        %v1176 = vpop.f32.mrf.mxu0
        %v1177 = vpop.f32.mrf.mxu0
        %v1178 = vadd.f32 %v1026, %v1177
        %v1179 = vpop.f32.mrf.mxu0
        %1180 = vmatprep.mubr.bf16.mxu0 0
        %1181 = vmatmul.mubr.bf16.gmra.mxu0 %v982
        %v1182 = vpop.f32.mrf.mxu0
        %v1183 = vadd.f32 %v1026, %v1182
        %v1184 = vpop.f32.mrf.mxu0
        %v1185 = vpop.f32.mrf.mxu0
        %v1186 = vadd.f32 %v1026, %v1185
        %v1187 = vpop.f32.mrf.mxu0
        %1188 = vmatprep.mubr.bf16.mxu0 0
        %1189 = vmatmul.mubr.bf16.gmra.mxu0 %v983
        %v1190 = vpop.f32.mrf.mxu0
        %v1191 = vadd.f32 %v1026, %v1190
        %v1192 = vpop.f32.mrf.mxu0
        %v1193 = vpop.f32.mrf.mxu0
        %v1194 = vadd.f32 %v1026, %v1193
        %v1195 = vpop.f32.mrf.mxu0
        %1196 = vmatprep.mubr.bf16.mxu0 0
        %1197 = vmatmul.mubr.bf16.gmra.mxu0 %v984
        %v1198 = vpop.f32.mrf.mxu0
        %v1199 = vadd.f32 %v1026, %v1198
        %v1200 = vpop.f32.mrf.mxu0
        %v1201 = vpop.f32.mrf.mxu0
        %v1202 = vadd.f32 %v1026, %v1201
        %v1203 = vpop.f32.mrf.mxu0
        %1204 = vmatprep.mubr.bf16.mxu0 0
        %1205 = vmatmul.mubr.bf16.gmra.mxu0 %v985
        %v1206 = vpop.f32.mrf.mxu0
        %v1207 = vadd.f32 %v1026, %v1206
        %v1208 = vpop.f32.mrf.mxu0
        %v1209 = vpop.f32.mrf.mxu0
        %v1210 = vadd.f32 %v1026, %v1209
        %v1211 = vpop.f32.mrf.mxu0
        %1212 = vmatprep.mubr.bf16.mxu0 0
        %1213 = vmatmul.mubr.bf16.gmra.mxu0 %v986
        %v1214 = vpop.f32.mrf.mxu0
        %v1215 = vadd.f32 %v1026, %v1214
        %v1216 = vpop.f32.mrf.mxu0
        %v1217 = vpop.f32.mrf.mxu0
        %v1218 = vadd.f32 %v1026, %v1217
        %v1219 = vpop.f32.mrf.mxu0
        %1220 = vmatprep.mubr.bf16.mxu0 0
        %1221 = vmatmul.mubr.bf16.gmra.mxu0 %v987
        %v1222 = vpop.f32.mrf.mxu0
        %v1223 = vadd.f32 %v1026, %v1222
        %v1224 = vpop.f32.mrf.mxu0
        %v1225 = vpop.f32.mrf.mxu0
        %v1226 = vadd.f32 %v1026, %v1225
        %v1227 = vpop.f32.mrf.mxu0
        %1228 = vmatprep.mubr.bf16.mxu0 0
        %1229 = vmatmul.mubr.bf16.gmra.mxu0 %v988
        %v1230 = vpop.f32.mrf.mxu0
        %v1231 = vadd.f32 %v1026, %v1230
        %v1232 = vpop.f32.mrf.mxu0
        %v1233 = vpop.f32.mrf.mxu0
        %v1234 = vadd.f32 %v1026, %v1233
        %v1235 = vpop.f32.mrf.mxu0
        %1236 = vmatprep.mubr.bf16.mxu0 0
        %1237 = vmatmul.mubr.bf16.gmra.mxu0 %v989
        %v1238 = vpop.f32.mrf.mxu0
        %v1239 = vadd.f32 %v1026, %v1238
        %v1240 = vpop.f32.mrf.mxu0
        %v1241 = vpop.f32.mrf.mxu0
        %v1242 = vadd.f32 %v1026, %v1241
        %v1243 = vpop.f32.mrf.mxu0
        %1244 = vmatprep.mubr.bf16.mxu0 0
        %1245 = vmatmul.mubr.bf16.gmra.mxu0 %v990
        %v1246 = vpop.f32.mrf.mxu0
        %v1247 = vadd.f32 %v1026, %v1246
        %v1248 = vpop.f32.mrf.mxu0
        %v1249 = vpop.f32.mrf.mxu0
        %v1250 = vadd.f32 %v1026, %v1249
        %v1251 = vpop.f32.mrf.mxu0
        %1252 = vmatprep.mubr.bf16.mxu0 0
        %1253 = vmatmul.mubr.bf16.gmra.mxu0 %v991
        %v1254 = vpop.f32.mrf.mxu0
        %v1255 = vadd.f32 %v1026, %v1254
        %v1256 = vpop.f32.mrf.mxu0
        %v1257 = vpop.f32.mrf.mxu0
        %v1258 = vadd.f32 %v1026, %v1257
        %v1259 = vpop.f32.mrf.mxu0
        %1260 = vmatprep.mubr.bf16.mxu0 0
        %1261 = vmatmul.mubr.bf16.gmra.mxu0 %v992
        %v1262 = vpop.f32.mrf.mxu0
        %v1263 = vadd.f32 %v1026, %v1262
        %v1264 = vpop.f32.mrf.mxu0
        %v1265 = vpop.f32.mrf.mxu0
        %v1266 = vadd.f32 %v1026, %v1265
        %v1267 = vpop.f32.mrf.mxu0
        %1268 = vmatprep.mubr.bf16.mxu0 0
        %1269 = vmatmul.mubr.bf16.gmra.mxu0 %v993
        %v1270 = vpop.f32.mrf.mxu0
        %v1271 = vadd.f32 %v1026, %v1270
        %v1272 = vpop.f32.mrf.mxu0
        %v1273 = vpop.f32.mrf.mxu0
        %v1274 = vadd.f32 %v1026, %v1273
        %v1275 = vpop.f32.mrf.mxu0
        %1276 = vmatprep.mubr.bf16.mxu0 0
        %1277 = vmatmul.mubr.bf16.gmra.mxu0 %v994
        %v1278 = vpop.f32.mrf.mxu0
        %v1279 = vadd.f32 %v1026, %v1278
        %v1280 = vpop.f32.mrf.mxu0
        %v1281 = vpop.f32.mrf.mxu0
        %v1282 = vadd.f32 %v1026, %v1281
        %v1283 = vpop.f32.mrf.mxu0
        %1284 = vmatprep.mubr.bf16.mxu0 0
        %1285 = vmatmul.mubr.bf16.gmra.mxu0 %v995
        %v1286 = vpop.f32.mrf.mxu0
        %v1287 = vadd.f32 %v1026, %v1286
        %v1288 = vpop.f32.mrf.mxu0
        %v1289 = vpop.f32.mrf.mxu0
        %v1290 = vadd.f32 %v1026, %v1289
        %v1291 = vpop.f32.mrf.mxu0
        %1292 = vmatprep.mubr.bf16.mxu0 0
        %1293 = vmatmul.mubr.bf16.gmra.mxu0 %v996
        %v1294 = vpop.f32.mrf.mxu0
        %v1295 = vadd.f32 %v1026, %v1294
        %v1296 = vpop.f32.mrf.mxu0
        %v1297 = vpop.f32.mrf.mxu0
        %v1298 = vadd.f32 %v1026, %v1297
        %v1299 = vpop.f32.mrf.mxu0
        %1300 = vmatprep.mubr.bf16.mxu0 0
        %1301 = vmatmul.mubr.bf16.gmra.mxu0 %v997
        %v1302 = vpop.f32.mrf.mxu0
        %v1303 = vadd.f32 %v1026, %v1302
        %v1304 = vpop.f32.mrf.mxu0
        %v1305 = vpop.f32.mrf.mxu0
        %v1306 = vadd.f32 %v1026, %v1305
        %v1307 = vpop.f32.mrf.mxu0
        %1308 = vmatprep.mubr.bf16.mxu0 0
        %1309 = vmatmul.mubr.bf16.gmra.mxu0 %v998
        %v1310 = vpop.f32.mrf.mxu0
        %v1311 = vadd.f32 %v1026, %v1310
        %v1312 = vpop.f32.mrf.mxu0
        %v1313 = vpop.f32.mrf.mxu0
        %v1314 = vadd.f32 %v1026, %v1313
        %v1315 = vpop.f32.mrf.mxu0
        %1316 = vmatprep.mubr.bf16.mxu0 0
        %1317 = vmatmul.mubr.bf16.gmra.mxu0 %v999
        %v1318 = vpop.f32.mrf.mxu0
        %v1319 = vadd.f32 %v1026, %v1318
        %v1320 = vpop.f32.mrf.mxu0
        %v1321 = vpop.f32.mrf.mxu0
        %v1322 = vadd.f32 %v1026, %v1321
        %v1323 = vpop.f32.mrf.mxu0
        %1324 = vmatprep.mubr.bf16.mxu0 0
        %1325 = vmatmul.mubr.bf16.gmra.mxu0 %v1000
        %v1326 = vpop.f32.mrf.mxu0
        %v1327 = vadd.f32 %v1026, %v1326
        %v1328 = vpop.f32.mrf.mxu0
        %v1329 = vpop.f32.mrf.mxu0
        %v1330 = vadd.f32 %v1026, %v1329
        %v1331 = vpop.f32.mrf.mxu0
        %1332 = vmatprep.mubr.bf16.mxu0 0
        %1333 = vmatmul.mubr.bf16.gmra.mxu0 %v1001
        %v1334 = vpop.f32.mrf.mxu0
        %v1335 = vadd.f32 %v1026, %v1334
        %v1336 = vpop.f32.mrf.mxu0
        %v1337 = vpop.f32.mrf.mxu0
        %v1338 = vadd.f32 %v1026, %v1337
        %v1339 = vpop.f32.mrf.mxu0
        %1340 = vmatprep.mubr.bf16.mxu0 0
        %1341 = vmatmul.mubr.bf16.gmra.mxu0 %v1002
        %v1342 = vpop.f32.mrf.mxu0
        %v1343 = vadd.f32 %v1026, %v1342
        %v1344 = vpop.f32.mrf.mxu0
        %v1345 = vpop.f32.mrf.mxu0
        %v1346 = vadd.f32 %v1026, %v1345
        %v1347 = vpop.f32.mrf.mxu0
        %1348 = vmatprep.mubr.bf16.mxu0 0
        %1349 = vmatmul.mubr.bf16.gmra.mxu0 %v1003
        %v1350 = vpop.f32.mrf.mxu0
        %v1351 = vadd.f32 %v1026, %v1350
        %v1352 = vpop.f32.mrf.mxu0
        %v1353 = vpop.f32.mrf.mxu0
        %v1354 = vadd.f32 %v1026, %v1353
        %v1355 = vpop.f32.mrf.mxu0
        %1356 = vmatprep.mubr.bf16.mxu0 0
        %1357 = vmatmul.mubr.bf16.gmra.mxu0 %v1004
        %v1358 = vpop.f32.mrf.mxu0
        %v1359 = vadd.f32 %v1026, %v1358
        %v1360 = vpop.f32.mrf.mxu0
        %v1361 = vpop.f32.mrf.mxu0
        %v1362 = vadd.f32 %v1026, %v1361
        %v1363 = vpop.f32.mrf.mxu0
        %1364 = vdwg.mxu0
        %v1365 = vsub.f32 0.0, %v1111
        %v1366 = vsub.f32 0.0, %v1114
        %v1367 = vsub.f32 0.0, %v1119
        %v1368 = vsub.f32 0.0, %v1122
        %v1369 = vsub.f32 0.0, %v1127
        %v1370 = vsub.f32 0.0, %v1130
        %v1371 = vsub.f32 0.0, %v1135
        %v1372 = vsub.f32 0.0, %v1138
        %v1373 = vsub.f32 0.0, %v1143
        %v1374 = vsub.f32 0.0, %v1146
        %v1375 = vsub.f32 0.0, %v1151
        %v1376 = vsub.f32 0.0, %v1154
        %v1377 = vsub.f32 0.0, %v1159
        %v1378 = vsub.f32 0.0, %v1162
        %v1379 = vsub.f32 0.0, %v1167
        %v1380 = vsub.f32 0.0, %v1170
        %v1381 = vsub.f32 0.0, %v1175
        %v1382 = vsub.f32 0.0, %v1178
        %v1383 = vsub.f32 0.0, %v1183
        %v1384 = vsub.f32 0.0, %v1186
        %v1385 = vsub.f32 0.0, %v1191
        %v1386 = vsub.f32 0.0, %v1194
        %v1387 = vsub.f32 0.0, %v1199
        %v1388 = vsub.f32 0.0, %v1202
        %v1389 = vsub.f32 0.0, %v1207
        %v1390 = vsub.f32 0.0, %v1210
        %v1391 = vsub.f32 0.0, %v1215
        %v1392 = vsub.f32 0.0, %v1218
        %v1393 = vsub.f32 0.0, %v1223
        %v1394 = vsub.f32 0.0, %v1226
        %v1395 = vsub.f32 0.0, %v1231
        %v1396 = vsub.f32 0.0, %v1234
        %v1397 = vsub.f32 0.0, %v1239
        %v1398 = vsub.f32 0.0, %v1242
        %v1399 = vsub.f32 0.0, %v1247
        %v1400 = vsub.f32 0.0, %v1250
        %v1401 = vsub.f32 0.0, %v1255
        %v1402 = vsub.f32 0.0, %v1258
        %v1403 = vsub.f32 0.0, %v1263
        %v1404 = vsub.f32 0.0, %v1266
        %v1405 = vsub.f32 0.0, %v1271
        %v1406 = vsub.f32 0.0, %v1274
        %v1407 = vsub.f32 0.0, %v1279
        %v1408 = vsub.f32 0.0, %v1282
        %v1409 = vsub.f32 0.0, %v1287
        %v1410 = vsub.f32 0.0, %v1290
        %v1411 = vsub.f32 0.0, %v1295
        %v1412 = vsub.f32 0.0, %v1298
        %v1413 = vsub.f32 0.0, %v1303
        %v1414 = vsub.f32 0.0, %v1306
        %v1415 = vsub.f32 0.0, %v1311
        %v1416 = vsub.f32 0.0, %v1314
        %v1417 = vsub.f32 0.0, %v1319
        %v1418 = vsub.f32 0.0, %v1322
        %v1419 = vsub.f32 0.0, %v1327
        %v1420 = vsub.f32 0.0, %v1330
        %v1421 = vsub.f32 0.0, %v1335
        %v1422 = vsub.f32 0.0, %v1338
        %v1423 = vsub.f32 0.0, %v1343
        %v1424 = vsub.f32 0.0, %v1346
        %v1425 = vsub.f32 0.0, %v1351
        %v1426 = vsub.f32 0.0, %v1354
        %v1427 = vsub.f32 0.0, %v1359
        %v1428 = vsub.f32 0.0, %v1362
        %v1429 = vmul.f32 %v1365, 1.442695
        %v1430 = vpow.pop %v1429
        %v1431 = vmul.f32 %v1366, 1.442695
        %v1432 = vpow.pop %v1431
        %v1433 = vmul.f32 %v1367, 1.442695
        %v1434 = vpow.pop %v1433
        %v1435 = vmul.f32 %v1368, 1.442695
        %v1436 = vpow.pop %v1435
        %v1437 = vmul.f32 %v1369, 1.442695
        %v1438 = vpow.pop %v1437
        %v1439 = vmul.f32 %v1370, 1.442695
        %v1440 = vpow.pop %v1439
        %v1441 = vmul.f32 %v1371, 1.442695
        %v1442 = vpow.pop %v1441
        %v1443 = vmul.f32 %v1372, 1.442695
        %v1444 = vpow.pop %v1443
        %v1445 = vmul.f32 %v1373, 1.442695
        %v1446 = vpow.pop %v1445
        %v1447 = vmul.f32 %v1374, 1.442695
        %v1448 = vpow.pop %v1447
        %v1449 = vmul.f32 %v1375, 1.442695
        %v1450 = vpow.pop %v1449
        %v1451 = vmul.f32 %v1376, 1.442695
        %v1452 = vpow.pop %v1451
        %v1453 = vmul.f32 %v1377, 1.442695
        %v1454 = vpow.pop %v1453
        %v1455 = vmul.f32 %v1378, 1.442695
        %v1456 = vpow.pop %v1455
        %v1457 = vmul.f32 %v1379, 1.442695
        %v1458 = vpow.pop %v1457
        %v1459 = vmul.f32 %v1380, 1.442695
        %v1460 = vpow.pop %v1459
        %v1461 = vmul.f32 %v1381, 1.442695
        %v1462 = vpow.pop %v1461
        %v1463 = vmul.f32 %v1382, 1.442695
        %v1464 = vpow.pop %v1463
        %v1465 = vmul.f32 %v1383, 1.442695
        %v1466 = vpow.pop %v1465
        %v1467 = vmul.f32 %v1384, 1.442695
        %v1468 = vpow.pop %v1467
        %v1469 = vmul.f32 %v1385, 1.442695
        %v1470 = vpow.pop %v1469
        %v1471 = vmul.f32 %v1386, 1.442695
        %v1472 = vpow.pop %v1471
        %v1473 = vmul.f32 %v1387, 1.442695
        %v1474 = vpow.pop %v1473
        %v1475 = vmul.f32 %v1388, 1.442695
        %v1476 = vpow.pop %v1475
        %v1477 = vmul.f32 %v1389, 1.442695
        %v1478 = vpow.pop %v1477
        %v1479 = vmul.f32 %v1390, 1.442695
        %v1480 = vpow.pop %v1479
        %v1481 = vmul.f32 %v1391, 1.442695
        %v1482 = vpow.pop %v1481
        %v1483 = vmul.f32 %v1392, 1.442695
        %v1484 = vpow.pop %v1483
        %v1485 = vmul.f32 %v1393, 1.442695
        %v1486 = vpow.pop %v1485
        %v1487 = vmul.f32 %v1394, 1.442695
        %v1488 = vpow.pop %v1487
        %v1489 = vmul.f32 %v1395, 1.442695
        %v1490 = vpow.pop %v1489
        %v1491 = vmul.f32 %v1396, 1.442695
        %v1492 = vpow.pop %v1491
        %v1493 = vmul.f32 %v1397, 1.442695
        %v1494 = vpow.pop %v1493
        %v1495 = vmul.f32 %v1398, 1.442695
        %v1496 = vpow.pop %v1495
        %v1497 = vmul.f32 %v1399, 1.442695
        %v1498 = vpow.pop %v1497
        %v1499 = vmul.f32 %v1400, 1.442695
        %v1500 = vpow.pop %v1499
        %v1501 = vmul.f32 %v1401, 1.442695
        %v1502 = vpow.pop %v1501
        %v1503 = vmul.f32 %v1402, 1.442695
        %v1504 = vpow.pop %v1503
        %v1505 = vmul.f32 %v1403, 1.442695
        %v1506 = vpow.pop %v1505
        %v1507 = vmul.f32 %v1404, 1.442695
        %v1508 = vpow.pop %v1507
        %v1509 = vmul.f32 %v1405, 1.442695
        %v1510 = vpow.pop %v1509
        %v1511 = vmul.f32 %v1406, 1.442695
        %v1512 = vpow.pop %v1511
        %v1513 = vmul.f32 %v1407, 1.442695
        %v1514 = vpow.pop %v1513
        %v1515 = vmul.f32 %v1408, 1.442695
        %v1516 = vpow.pop %v1515
        %v1517 = vmul.f32 %v1409, 1.442695
        %v1518 = vpow.pop %v1517
        %v1519 = vmul.f32 %v1410, 1.442695
        %v1520 = vpow.pop %v1519
        %v1521 = vmul.f32 %v1411, 1.442695
        %v1522 = vpow.pop %v1521
        %v1523 = vmul.f32 %v1412, 1.442695
        %v1524 = vpow.pop %v1523
        %v1525 = vmul.f32 %v1413, 1.442695
        %v1526 = vpow.pop %v1525
        %v1527 = vmul.f32 %v1414, 1.442695
        %v1528 = vpow.pop %v1527
        %v1529 = vmul.f32 %v1415, 1.442695
        %v1530 = vpow.pop %v1529
        %v1531 = vmul.f32 %v1416, 1.442695
        %v1532 = vpow.pop %v1531
        %v1533 = vmul.f32 %v1417, 1.442695
        %v1534 = vpow.pop %v1533
        %v1535 = vmul.f32 %v1418, 1.442695
        %v1536 = vpow.pop %v1535
        %v1537 = vmul.f32 %v1419, 1.442695
        %v1538 = vpow.pop %v1537
        %v1539 = vmul.f32 %v1420, 1.442695
        %v1540 = vpow.pop %v1539
        %v1541 = vmul.f32 %v1421, 1.442695
        %v1542 = vpow.pop %v1541
        %v1543 = vmul.f32 %v1422, 1.442695
        %v1544 = vpow.pop %v1543
        %v1545 = vmul.f32 %v1423, 1.442695
        %v1546 = vpow.pop %v1545
        %v1547 = vmul.f32 %v1424, 1.442695
        %v1548 = vpow.pop %v1547
        %v1549 = vmul.f32 %v1425, 1.442695
        %v1550 = vpow.pop %v1549
        %v1551 = vmul.f32 %v1426, 1.442695
        %v1552 = vpow.pop %v1551
        %v1553 = vmul.f32 %v1427, 1.442695
        %v1554 = vpow.pop %v1553
        %v1555 = vmul.f32 %v1428, 1.442695
        %v1556 = vpow.pop %v1555
        %v1557 = vadd.f32 %v1430, 1.0
        %v1558 = vadd.f32 %v1432, 1.0
        %v1559 = vadd.f32 %v1434, 1.0
        %v1560 = vadd.f32 %v1436, 1.0
        %v1561 = vadd.f32 %v1438, 1.0
        %v1562 = vadd.f32 %v1440, 1.0
        %v1563 = vadd.f32 %v1442, 1.0
        %v1564 = vadd.f32 %v1444, 1.0
        %v1565 = vadd.f32 %v1446, 1.0
        %v1566 = vadd.f32 %v1448, 1.0
        %v1567 = vadd.f32 %v1450, 1.0
        %v1568 = vadd.f32 %v1452, 1.0
        %v1569 = vadd.f32 %v1454, 1.0
        %v1570 = vadd.f32 %v1456, 1.0
        %v1571 = vadd.f32 %v1458, 1.0
        %v1572 = vadd.f32 %v1460, 1.0
        %v1573 = vadd.f32 %v1462, 1.0
        %v1574 = vadd.f32 %v1464, 1.0
        %v1575 = vadd.f32 %v1466, 1.0
        %v1576 = vadd.f32 %v1468, 1.0
        %v1577 = vadd.f32 %v1470, 1.0
        %v1578 = vadd.f32 %v1472, 1.0
        %v1579 = vadd.f32 %v1474, 1.0
        %v1580 = vadd.f32 %v1476, 1.0
        %v1581 = vadd.f32 %v1478, 1.0
        %v1582 = vadd.f32 %v1480, 1.0
        %v1583 = vadd.f32 %v1482, 1.0
        %v1584 = vadd.f32 %v1484, 1.0
        %v1585 = vadd.f32 %v1486, 1.0
        %v1586 = vadd.f32 %v1488, 1.0
        %v1587 = vadd.f32 %v1490, 1.0
        %v1588 = vadd.f32 %v1492, 1.0
        %v1589 = vadd.f32 %v1494, 1.0
        %v1590 = vadd.f32 %v1496, 1.0
        %v1591 = vadd.f32 %v1498, 1.0
        %v1592 = vadd.f32 %v1500, 1.0
        %v1593 = vadd.f32 %v1502, 1.0
        %v1594 = vadd.f32 %v1504, 1.0
        %v1595 = vadd.f32 %v1506, 1.0
        %v1596 = vadd.f32 %v1508, 1.0
        %v1597 = vadd.f32 %v1510, 1.0
        %v1598 = vadd.f32 %v1512, 1.0
        %v1599 = vadd.f32 %v1514, 1.0
        %v1600 = vadd.f32 %v1516, 1.0
        %v1601 = vadd.f32 %v1518, 1.0
        %v1602 = vadd.f32 %v1520, 1.0
        %v1603 = vadd.f32 %v1522, 1.0
        %v1604 = vadd.f32 %v1524, 1.0
        %v1605 = vadd.f32 %v1526, 1.0
        %v1606 = vadd.f32 %v1528, 1.0
        %v1607 = vadd.f32 %v1530, 1.0
        %v1608 = vadd.f32 %v1532, 1.0
        %v1609 = vadd.f32 %v1534, 1.0
        %v1610 = vadd.f32 %v1536, 1.0
        %v1611 = vadd.f32 %v1538, 1.0
        %v1612 = vadd.f32 %v1540, 1.0
        %v1613 = vadd.f32 %v1542, 1.0
        %v1614 = vadd.f32 %v1544, 1.0
        %v1615 = vadd.f32 %v1546, 1.0
        %v1616 = vadd.f32 %v1548, 1.0
        %v1617 = vadd.f32 %v1550, 1.0
        %v1618 = vadd.f32 %v1552, 1.0
        %v1619 = vadd.f32 %v1554, 1.0
        %v1620 = vadd.f32 %v1556, 1.0
        %v1621 = vrcp.pop %v1557
        %v1622 = vrcp.pop %v1558
        %v1623 = vrcp.pop %v1559
        %v1624 = vrcp.pop %v1560
        %v1625 = vrcp.pop %v1561
        %v1626 = vrcp.pop %v1562
        %v1627 = vrcp.pop %v1563
        %v1628 = vrcp.pop %v1564
        %v1629 = vrcp.pop %v1565
        %v1630 = vrcp.pop %v1566
        %v1631 = vrcp.pop %v1567
        %v1632 = vrcp.pop %v1568
        %v1633 = vrcp.pop %v1569
        %v1634 = vrcp.pop %v1570
        %v1635 = vrcp.pop %v1571
        %v1636 = vrcp.pop %v1572
        %v1637 = vrcp.pop %v1573
        %v1638 = vrcp.pop %v1574
        %v1639 = vrcp.pop %v1575
        %v1640 = vrcp.pop %v1576
        %v1641 = vrcp.pop %v1577
        %v1642 = vrcp.pop %v1578
        %v1643 = vrcp.pop %v1579
        %v1644 = vrcp.pop %v1580
        %v1645 = vrcp.pop %v1581
        %v1646 = vrcp.pop %v1582
        %v1647 = vrcp.pop %v1583
        %v1648 = vrcp.pop %v1584
        %v1649 = vrcp.pop %v1585
        %v1650 = vrcp.pop %v1586
        %v1651 = vrcp.pop %v1587
        %v1652 = vrcp.pop %v1588
        %v1653 = vrcp.pop %v1589
        %v1654 = vrcp.pop %v1590
        %v1655 = vrcp.pop %v1591
        %v1656 = vrcp.pop %v1592
        %v1657 = vrcp.pop %v1593
        %v1658 = vrcp.pop %v1594
        %v1659 = vrcp.pop %v1595
        %v1660 = vrcp.pop %v1596
        %v1661 = vrcp.pop %v1597
        %v1662 = vrcp.pop %v1598
        %v1663 = vrcp.pop %v1599
        %v1664 = vrcp.pop %v1600
        %v1665 = vrcp.pop %v1601
        %v1666 = vrcp.pop %v1602
        %v1667 = vrcp.pop %v1603
        %v1668 = vrcp.pop %v1604
        %v1669 = vrcp.pop %v1605
        %v1670 = vrcp.pop %v1606
        %v1671 = vrcp.pop %v1607
        %v1672 = vrcp.pop %v1608
        %v1673 = vrcp.pop %v1609
        %v1674 = vrcp.pop %v1610
        %v1675 = vrcp.pop %v1611
        %v1676 = vrcp.pop %v1612
        %v1677 = vrcp.pop %v1613
        %v1678 = vrcp.pop %v1614
        %v1679 = vrcp.pop %v1615
        %v1680 = vrcp.pop %v1616
        %v1681 = vrcp.pop %v1617
        %v1682 = vrcp.pop %v1618
        %v1683 = vrcp.pop %v1619
        %v1684 = vrcp.pop %v1620
        %v1685 = vlaneseq
        %v1686 = vand.u32 %v1685, 127
        %vm1687 = vcmp.lt.s32.totalorder %v1686, 3
        %v1688 = vsel %vm1687, %v1621, %v1111
        %v1689 = vsel %vm1687, %v1622, %v1114
        %v1690 = vsel %vm1687, %v1623, %v1119
        %v1691 = vsel %vm1687, %v1624, %v1122
        %v1692 = vsel %vm1687, %v1625, %v1127
        %v1693 = vsel %vm1687, %v1626, %v1130
        %v1694 = vsel %vm1687, %v1627, %v1135
        %v1695 = vsel %vm1687, %v1628, %v1138
        %v1696 = vsel %vm1687, %v1629, %v1143
        %v1697 = vsel %vm1687, %v1630, %v1146
        %v1698 = vsel %vm1687, %v1631, %v1151
        %v1699 = vsel %vm1687, %v1632, %v1154
        %v1700 = vsel %vm1687, %v1633, %v1159
        %v1701 = vsel %vm1687, %v1634, %v1162
        %v1702 = vsel %vm1687, %v1635, %v1167
        %v1703 = vsel %vm1687, %v1636, %v1170
        %v1704 = vsel %vm1687, %v1637, %v1175
        %v1705 = vsel %vm1687, %v1638, %v1178
        %v1706 = vsel %vm1687, %v1639, %v1183
        %v1707 = vsel %vm1687, %v1640, %v1186
        %v1708 = vsel %vm1687, %v1641, %v1191
        %v1709 = vsel %vm1687, %v1642, %v1194
        %v1710 = vsel %vm1687, %v1643, %v1199
        %v1711 = vsel %vm1687, %v1644, %v1202
        %v1712 = vsel %vm1687, %v1645, %v1207
        %v1713 = vsel %vm1687, %v1646, %v1210
        %v1714 = vsel %vm1687, %v1647, %v1215
        %v1715 = vsel %vm1687, %v1648, %v1218
        %v1716 = vsel %vm1687, %v1649, %v1223
        %v1717 = vsel %vm1687, %v1650, %v1226
        %v1718 = vsel %vm1687, %v1651, %v1231
        %v1719 = vsel %vm1687, %v1652, %v1234
        %v1720 = vsel %vm1687, %v1653, %v1239
        %v1721 = vsel %vm1687, %v1654, %v1242
        %v1722 = vsel %vm1687, %v1655, %v1247
        %v1723 = vsel %vm1687, %v1656, %v1250
        %v1724 = vsel %vm1687, %v1657, %v1255
        %v1725 = vsel %vm1687, %v1658, %v1258
        %v1726 = vsel %vm1687, %v1659, %v1263
        %v1727 = vsel %vm1687, %v1660, %v1266
        %v1728 = vsel %vm1687, %v1661, %v1271
        %v1729 = vsel %vm1687, %v1662, %v1274
        %v1730 = vsel %vm1687, %v1663, %v1279
        %v1731 = vsel %vm1687, %v1664, %v1282
        %v1732 = vsel %vm1687, %v1665, %v1287
        %v1733 = vsel %vm1687, %v1666, %v1290
        %v1734 = vsel %vm1687, %v1667, %v1295
        %v1735 = vsel %vm1687, %v1668, %v1298
        %v1736 = vsel %vm1687, %v1669, %v1303
        %v1737 = vsel %vm1687, %v1670, %v1306
        %v1738 = vsel %vm1687, %v1671, %v1311
        %v1739 = vsel %vm1687, %v1672, %v1314
        %v1740 = vsel %vm1687, %v1673, %v1319
        %v1741 = vsel %vm1687, %v1674, %v1322
        %v1742 = vsel %vm1687, %v1675, %v1327
        %v1743 = vsel %vm1687, %v1676, %v1330
        %v1744 = vsel %vm1687, %v1677, %v1335
        %v1745 = vsel %vm1687, %v1678, %v1338
        %v1746 = vsel %vm1687, %v1679, %v1343
        %v1747 = vsel %vm1687, %v1680, %v1346
        %v1748 = vsel %vm1687, %v1681, %v1351
        %v1749 = vsel %vm1687, %v1682, %v1354
        %v1750 = vsel %vm1687, %v1683, %v1359
        %v1751 = vsel %vm1687, %v1684, %v1362
        %v1752 = vpack.c.bf16 %v1689, %v1688
        %v1753 = vpack.c.bf16 %v1691, %v1690
        %v1754 = vpack.c.bf16 %v1693, %v1692
        %v1755 = vpack.c.bf16 %v1695, %v1694
        %v1756 = vpack.c.bf16 %v1697, %v1696
        %v1757 = vpack.c.bf16 %v1699, %v1698
        %v1758 = vpack.c.bf16 %v1701, %v1700
        %v1759 = vpack.c.bf16 %v1703, %v1702
        %v1760 = vpack.c.bf16 %v1705, %v1704
        %v1761 = vpack.c.bf16 %v1707, %v1706
        %v1762 = vpack.c.bf16 %v1709, %v1708
        %v1763 = vpack.c.bf16 %v1711, %v1710
        %v1764 = vpack.c.bf16 %v1713, %v1712
        %v1765 = vpack.c.bf16 %v1715, %v1714
        %v1766 = vpack.c.bf16 %v1717, %v1716
        %v1767 = vpack.c.bf16 %v1719, %v1718
        %v1768 = vpack.c.bf16 %v1721, %v1720
        %v1769 = vpack.c.bf16 %v1723, %v1722
        %v1770 = vpack.c.bf16 %v1725, %v1724
        %v1771 = vpack.c.bf16 %v1727, %v1726
        %v1772 = vpack.c.bf16 %v1729, %v1728
        %v1773 = vpack.c.bf16 %v1731, %v1730
        %v1774 = vpack.c.bf16 %v1733, %v1732
        %v1775 = vpack.c.bf16 %v1735, %v1734
        %v1776 = vpack.c.bf16 %v1737, %v1736
        %v1777 = vpack.c.bf16 %v1739, %v1738
        %v1778 = vpack.c.bf16 %v1741, %v1740
        %v1779 = vpack.c.bf16 %v1743, %v1742
        %v1780 = vpack.c.bf16 %v1745, %v1744
        %v1781 = vpack.c.bf16 %v1747, %v1746
        %v1782 = vpack.c.bf16 %v1749, %v1748
        %v1783 = vpack.c.bf16 %v1751, %v1750
        %v1816 = vunpack.c.l.b16 %v1752
        %v1817 = vunpack.c.h.b16 %v1752
        %v1818 = vunpack.c.l.b16 %v1753
        %v1819 = vunpack.c.h.b16 %v1753
        %v1820 = vunpack.c.l.b16 %v1754
        %v1821 = vunpack.c.h.b16 %v1754
        %v1822 = vunpack.c.l.b16 %v1755
        %v1823 = vunpack.c.h.b16 %v1755
        %v1824 = vunpack.c.l.b16 %v1756
        %v1825 = vunpack.c.h.b16 %v1756
        %v1826 = vunpack.c.l.b16 %v1757
        %v1827 = vunpack.c.h.b16 %v1757
        %v1828 = vunpack.c.l.b16 %v1758
        %v1829 = vunpack.c.h.b16 %v1758
        %v1830 = vunpack.c.l.b16 %v1759
        %v1831 = vunpack.c.h.b16 %v1759
        %v1832 = vunpack.c.l.b16 %v1760
        %v1833 = vunpack.c.h.b16 %v1760
        %v1834 = vunpack.c.l.b16 %v1761
        %v1835 = vunpack.c.h.b16 %v1761
        %v1836 = vunpack.c.l.b16 %v1762
        %v1837 = vunpack.c.h.b16 %v1762
        %v1838 = vunpack.c.l.b16 %v1763
        %v1839 = vunpack.c.h.b16 %v1763
        %v1840 = vunpack.c.l.b16 %v1764
        %v1841 = vunpack.c.h.b16 %v1764
        %v1842 = vunpack.c.l.b16 %v1765
        %v1843 = vunpack.c.h.b16 %v1765
        %v1844 = vunpack.c.l.b16 %v1766
        %v1845 = vunpack.c.h.b16 %v1766
        %v1846 = vunpack.c.l.b16 %v1767
        %v1847 = vunpack.c.h.b16 %v1767
        %v1848 = vunpack.c.l.b16 %v1768
        %v1849 = vunpack.c.h.b16 %v1768
        %v1850 = vunpack.c.l.b16 %v1769
        %v1851 = vunpack.c.h.b16 %v1769
        %v1852 = vunpack.c.l.b16 %v1770
        %v1853 = vunpack.c.h.b16 %v1770
        %v1854 = vunpack.c.l.b16 %v1771
        %v1855 = vunpack.c.h.b16 %v1771
        %v1856 = vunpack.c.l.b16 %v1772
        %v1857 = vunpack.c.h.b16 %v1772
        %v1858 = vunpack.c.l.b16 %v1773
        %v1859 = vunpack.c.h.b16 %v1773
        %v1860 = vunpack.c.l.b16 %v1774
        %v1861 = vunpack.c.h.b16 %v1774
        %v1862 = vunpack.c.l.b16 %v1775
        %v1863 = vunpack.c.h.b16 %v1775
        %v1864 = vunpack.c.l.b16 %v1776
        %v1865 = vunpack.c.h.b16 %v1776
        %v1866 = vunpack.c.l.b16 %v1777
        %v1867 = vunpack.c.h.b16 %v1777
        %v1868 = vunpack.c.l.b16 %v1778
        %v1869 = vunpack.c.h.b16 %v1778
        %v1870 = vunpack.c.l.b16 %v1779
        %v1871 = vunpack.c.h.b16 %v1779
        %v1872 = vunpack.c.l.b16 %v1780
        %v1873 = vunpack.c.h.b16 %v1780
        %v1874 = vunpack.c.l.b16 %v1781
        %v1875 = vunpack.c.h.b16 %v1781
        %v1876 = vunpack.c.l.b16 %v1782
        %v1877 = vunpack.c.h.b16 %v1782
        %v1878 = vunpack.c.l.b16 %v1783
        %v1879 = vunpack.c.h.b16 %v1783
        %v1880 = vpack.c.b16 %v1816, %v1816
        %v1881 = vpack.c.b16 %v1817, %v1817
        %v1882 = vpack.c.b16 %v1818, %v1818
        %v1883 = vpack.c.b16 %v1819, %v1819
        %v1884 = vpack.c.b16 %v1820, %v1820
        %v1885 = vpack.c.b16 %v1821, %v1821
        %v1886 = vpack.c.b16 %v1822, %v1822
        %v1887 = vpack.c.b16 %v1823, %v1823
        %v1888 = vpack.c.b16 %v1824, %v1824
        %v1889 = vpack.c.b16 %v1825, %v1825
        %v1890 = vpack.c.b16 %v1826, %v1826
        %v1891 = vpack.c.b16 %v1827, %v1827
        %v1892 = vpack.c.b16 %v1828, %v1828
        %v1893 = vpack.c.b16 %v1829, %v1829
        %v1894 = vpack.c.b16 %v1830, %v1830
        %v1895 = vpack.c.b16 %v1831, %v1831
        %v1896 = vpack.c.b16 %v1832, %v1832
        %v1897 = vpack.c.b16 %v1833, %v1833
        %v1898 = vpack.c.b16 %v1834, %v1834
        %v1899 = vpack.c.b16 %v1835, %v1835
        %v1900 = vpack.c.b16 %v1836, %v1836
        %v1901 = vpack.c.b16 %v1837, %v1837
        %v1902 = vpack.c.b16 %v1838, %v1838
        %v1903 = vpack.c.b16 %v1839, %v1839
        %v1904 = vpack.c.b16 %v1840, %v1840
        %v1905 = vpack.c.b16 %v1841, %v1841
        %v1906 = vpack.c.b16 %v1842, %v1842
        %v1907 = vpack.c.b16 %v1843, %v1843
        %v1908 = vpack.c.b16 %v1844, %v1844
        %v1909 = vpack.c.b16 %v1845, %v1845
        %v1910 = vpack.c.b16 %v1846, %v1846
        %v1911 = vpack.c.b16 %v1847, %v1847
        %v1912 = vpack.c.b16 %v1848, %v1848
        %v1913 = vpack.c.b16 %v1849, %v1849
        %v1914 = vpack.c.b16 %v1850, %v1850
        %v1915 = vpack.c.b16 %v1851, %v1851
        %v1916 = vpack.c.b16 %v1852, %v1852
        %v1917 = vpack.c.b16 %v1853, %v1853
        %v1918 = vpack.c.b16 %v1854, %v1854
        %v1919 = vpack.c.b16 %v1855, %v1855
        %v1920 = vpack.c.b16 %v1856, %v1856
        %v1921 = vpack.c.b16 %v1857, %v1857
        %v1922 = vpack.c.b16 %v1858, %v1858
        %v1923 = vpack.c.b16 %v1859, %v1859
        %v1924 = vpack.c.b16 %v1860, %v1860
        %v1925 = vpack.c.b16 %v1861, %v1861
        %v1926 = vpack.c.b16 %v1862, %v1862
        %v1927 = vpack.c.b16 %v1863, %v1863
        %v1928 = vpack.c.b16 %v1864, %v1864
        %v1929 = vpack.c.b16 %v1865, %v1865
        %v1930 = vpack.c.b16 %v1866, %v1866
        %v1931 = vpack.c.b16 %v1867, %v1867
        %v1932 = vpack.c.b16 %v1868, %v1868
        %v1933 = vpack.c.b16 %v1869, %v1869
        %v1934 = vpack.c.b16 %v1870, %v1870
        %v1935 = vpack.c.b16 %v1871, %v1871
        %v1936 = vpack.c.b16 %v1872, %v1872
        %v1937 = vpack.c.b16 %v1873, %v1873
        %v1938 = vpack.c.b16 %v1874, %v1874
        %v1939 = vpack.c.b16 %v1875, %v1875
        %v1940 = vpack.c.b16 %v1876, %v1876
        %v1941 = vpack.c.b16 %v1877, %v1877
        %v1942 = vpack.c.b16 %v1878, %v1878
        %v1943 = vpack.c.b16 %v1879, %v1879
        %2008 = vst [vmem:[%s289] sm:$0xf] %v1880
        %2009 = vst [vmem:[%s289 + $0x4] sm:$0xf] %v1881
        %2010 = vst [vmem:[%s289 + $0x8] sm:$0xf] %v1882
        %2011 = vst [vmem:[%s289 + $0xc] sm:$0xf] %v1883
        %2012 = vst [vmem:[%s289 + $0x10] sm:$0xf] %v1884
        %2013 = vst [vmem:[%s289 + $0x14] sm:$0xf] %v1885
        %2014 = vst [vmem:[%s289 + $0x18] sm:$0xf] %v1886
        %2015 = vst [vmem:[%s289 + $0x1c] sm:$0xf] %v1887
        %2016 = vst [vmem:[%s289 + $0x20] sm:$0xf] %v1888
        %2017 = vst [vmem:[%s289 + $0x24] sm:$0xf] %v1889
        %2018 = vst [vmem:[%s289 + $0x28] sm:$0xf] %v1890
        %2019 = vst [vmem:[%s289 + $0x2c] sm:$0xf] %v1891
        %2020 = vst [vmem:[%s289 + $0x30] sm:$0xf] %v1892
        %2021 = vst [vmem:[%s289 + $0x34] sm:$0xf] %v1893
        %2022 = vst [vmem:[%s289 + $0x38] sm:$0xf] %v1894
        %2023 = vst [vmem:[%s289 + $0x3c] sm:$0xf] %v1895
        %2024 = vst [vmem:[%s289 + $0x40] sm:$0xf] %v1896
        %2025 = vst [vmem:[%s289 + $0x44] sm:$0xf] %v1897
        %2026 = vst [vmem:[%s289 + $0x48] sm:$0xf] %v1898
        %2027 = vst [vmem:[%s289 + $0x4c] sm:$0xf] %v1899
        %2028 = vst [vmem:[%s289 + $0x50] sm:$0xf] %v1900
        %2029 = vst [vmem:[%s289 + $0x54] sm:$0xf] %v1901
        %2030 = vst [vmem:[%s289 + $0x58] sm:$0xf] %v1902
        %2031 = vst [vmem:[%s289 + $0x5c] sm:$0xf] %v1903
        %2032 = vst [vmem:[%s289 + $0x60] sm:$0xf] %v1904
        %2033 = vst [vmem:[%s289 + $0x64] sm:$0xf] %v1905
        %2034 = vst [vmem:[%s289 + $0x68] sm:$0xf] %v1906
        %2035 = vst [vmem:[%s289 + $0x6c] sm:$0xf] %v1907
        %2036 = vst [vmem:[%s289 + $0x70] sm:$0xf] %v1908
        %2037 = vst [vmem:[%s289 + $0x74] sm:$0xf] %v1909
        %2038 = vst [vmem:[%s289 + $0x78] sm:$0xf] %v1910
        %2039 = vst [vmem:[%s289 + $0x7c] sm:$0xf] %v1911
        %2040 = vst [vmem:[%s289 + $0x80] sm:$0xf] %v1912
        %2041 = vst [vmem:[%s289 + $0x84] sm:$0xf] %v1913
        %2042 = vst [vmem:[%s289 + $0x88] sm:$0xf] %v1914
        %2043 = vst [vmem:[%s289 + $0x8c] sm:$0xf] %v1915
        %2044 = vst [vmem:[%s289 + $0x90] sm:$0xf] %v1916
        %2045 = vst [vmem:[%s289 + $0x94] sm:$0xf] %v1917
        %2046 = vst [vmem:[%s289 + $0x98] sm:$0xf] %v1918
        %2047 = vst [vmem:[%s289 + $0x9c] sm:$0xf] %v1919
        %2048 = vst [vmem:[%s289 + $0xa0] sm:$0xf] %v1920
        %2049 = vst [vmem:[%s289 + $0xa4] sm:$0xf] %v1921
        %2050 = vst [vmem:[%s289 + $0xa8] sm:$0xf] %v1922
        %2051 = vst [vmem:[%s289 + $0xac] sm:$0xf] %v1923
        %2052 = vst [vmem:[%s289 + $0xb0] sm:$0xf] %v1924
        %2053 = vst [vmem:[%s289 + $0xb4] sm:$0xf] %v1925
        %2054 = vst [vmem:[%s289 + $0xb8] sm:$0xf] %v1926
        %2055 = vst [vmem:[%s289 + $0xbc] sm:$0xf] %v1927
        %2056 = vst [vmem:[%s289 + $0xc0] sm:$0xf] %v1928
        %2057 = vst [vmem:[%s289 + $0xc4] sm:$0xf] %v1929
        %2058 = vst [vmem:[%s289 + $0xc8] sm:$0xf] %v1930
        %2059 = vst [vmem:[%s289 + $0xcc] sm:$0xf] %v1931
        %2060 = vst [vmem:[%s289 + $0xd0] sm:$0xf] %v1932
        %2061 = vst [vmem:[%s289 + $0xd4] sm:$0xf] %v1933
        %2062 = vst [vmem:[%s289 + $0xd8] sm:$0xf] %v1934
        %2063 = vst [vmem:[%s289 + $0xdc] sm:$0xf] %v1935
        %2064 = vst [vmem:[%s289 + $0xe0] sm:$0xf] %v1936
        %2065 = vst [vmem:[%s289 + $0xe4] sm:$0xf] %v1937
        %2066 = vst [vmem:[%s289 + $0xe8] sm:$0xf] %v1938
        %2067 = vst [vmem:[%s289 + $0xec] sm:$0xf] %v1939
        %2068 = vst [vmem:[%s289 + $0xf0] sm:$0xf] %v1940
        %2069 = vst [vmem:[%s289 + $0xf4] sm:$0xf] %v1941
        %2070 = vst [vmem:[%s289 + $0xf8] sm:$0xf] %v1942
        %2071 = vst [vmem:[%s289 + $0xfc] sm:$0xf] %v1943
        %s2072 = sand.u32 %s157, 1
        %s2073 = scalar_lea.sflag [#allocation4], %s2072
        %s2074 = sand.u32 %s157, 1
        %s2075 = smul.addr %s2074, 256
        %s2076 = scalar_lea.vmem [#allocation8], %s2075
        // Predicated region
        $region53: #{tpu_custom_call.1} parent=39 // pred_check
          %p2077 = pneg %p167
        $region54: #{tpu_custom_call.1} parent=39 // pred_check_branch
          %2079 = sbr.rel (%p2077) target = $region56
        $region55: #{tpu_custom_call.1} parent=39 // pred_region
          %s2080 = smul.u32 64, %s28
          %s2082 = ssub.s32 4096, 4096
          %2083 = vsyncadd %s2073, %s2082
          %s2084 = smul.addr %s27, 64
          %s2085 = sadd.s32 %s2080, %s2084
          %s2086 = smul.addr %s2085, 64
          %s2087 = scalar_lea.hbm %s5, %s2086
          %s2088 = sshll.u32 %s2076, 4
          %s2089 = int_to_ptr.vmem [resolvable:$true] %s2088
          %2094 = dma.vmem_to_hbm [thread:$0]  %s2089, 4096, %s2087, %s2073, 64, 64, 4
        $region56: #{tpu_custom_call.1} parent=39 // pred_fallthru
          _
      $region40: #{tpu_custom_call.1} parent=5 // pred_fallthru
        _
      %p2095 = scmp.le.s32.totalorder 2, %s18
      // Predicated region
      $region57: #{tpu_custom_call.1} parent=5 // pred_check
        %p2096 = pneg %p2095
      $region58: #{tpu_custom_call.1} parent=5 // pred_check_branch
        %2098 = sbr.rel (%p2096) target = $region60
      $region59: #{tpu_custom_call.1} parent=5 // pred_region
        %s2099 = ssub.s32 %s18, 2
        // Predicated region
        $region61: #{tpu_custom_call.1} parent=59 // pred_check
          %p2100 = pneg %p173
        $region62: #{tpu_custom_call.1} parent=59 // pred_check_branch
          %2102 = sbr.rel (%p2100) target = $region64
        $region63: #{tpu_custom_call.1} parent=59 // pred_region
          %s2103 = sand.u32 %s158, 1
          %s2104 = scalar_lea.sflag [#allocation4], %s2103
          %s2105 = sand.u32 %s158, 1
          %s2106 = smul.addr %s2105, 256
          %s2107 = scalar_lea.vmem [#allocation8], %s2106
          %2108 = dma.done %s2104, 4096
        $region64: #{tpu_custom_call.1} parent=59 // pred_fallthru
          _
      $region60: #{tpu_custom_call.1} parent=5 // pred_fallthru
        _
    $region6: #{tpu_custom_call.1} parent=1 // loop_footer
      %s22 = sadd.s32 1, %s18
    $region7: #{tpu_custom_call.1} parent=1 // loop_footer_branch
      %17 = sbr.rel target = $region3
    $region8: #{tpu_custom_call.1} parent=1 // loop_exit
      _
    %2109 = vsyncpa [#allocation3], 1
    %s2110 = scalar_lea.sflag [#allocation3], 1
    %2111 = vsyncpa %s2110, 1
    %2112 = vsyncpa [#allocation6], 1
    %2113 = vsyncpa [#allocation4], 1
    %s2114 = scalar_lea.sflag [#allocation4], 1
    %2115 = vsyncpa %s2114, 1

</llo_original>
